<compile_context>
chip_gen: v7x
topology: tpu7x:2x2x1
jax: 0.10.0
libtpu: 0.0.40
codegen_flags: <defaults>
</compile_context>

<pallas_src>
import jax
import jax.numpy as jnp
from jax.experimental import pallas as pl
from jax.experimental.pallas import tpu as pltpu

EPS_BN = 1e-5
OUT_LANES = 128  # lane-dense width of the final output slab


# ---------------------------------------------------------------------------
# Fused Pallas kernel (entire per-graph forward pass; grid axis = graph)
# ---------------------------------------------------------------------------
def _make_gcn_kernel(n_layers, n_nodes, c, skip_src, mxu_dtype):
    """Build the fused kernel, specialized on the static skip-connection map."""

    def kernel(x_ref, aa_ref, w1_ref, w2_ref, g_ref, b_ref, wo_ref, bo_ref,
               o_ref, zs_ref):
        aa = aa_ref[...]                        # (N, 2N)  [A_hat | A_hat^T]
        x = x_ref[...].astype(jnp.float32)      # (N, C)   padded node features
        saved = {}                              # post-ReLU layer outputs

        for i in range(n_layers):
            is_last = i == n_layers - 1
            xm = x.astype(mxu_dtype)

            # BiGraphConv with host-fused weights (W1 = Wc@L1, W2 = Wc@L2):
            #   h = A_hat @ (X W1) + A_hat^T @ (X W2)
            #     = [A_hat | A_hat^T] @ [X W1 ; X W2]        -> 3 MXU pushes
            z1 = jnp.dot(xm, w1_ref[i], preferred_element_type=jnp.float32)
            z2 = jnp.dot(xm, w2_ref[i], preferred_element_type=jnp.float32)
            zs_ref[:n_nodes, :] = z1.astype(mxu_dtype)
            zs_ref[n_nodes:, :] = z2.astype(mxu_dtype)
            h = jnp.dot(aa, zs_ref[...], preferred_element_type=jnp.float32)

            skip = saved[skip_src[i]] if i in skip_src else None
            if is_last and skip is not None:
                h = h + skip                    # last layer: skip before BN

            # BatchNorm1d (training-mode batch stats) folded to scale/shift.
            mean = jnp.mean(h, axis=0, keepdims=True)
            var = jnp.mean(jnp.square(h - mean), axis=0, keepdims=True)
            scale = g_ref[i] * jax.lax.rsqrt(var + EPS_BN)
            shift = b_ref[i] - mean * scale
            y = h * scale + shift

            if not is_last:
                if skip is not None:
                    y = y + skip                # middle layers: skip before ReLU
                y = jnp.maximum(y, 0.0)

            saved[i] = y
            x = y

        # Dropout(0.1) before the output Linear: eval-mode identity.
        # TODO(synk): training-mode Dropout randomness not reproduced.
        out = jnp.dot(x.astype(mxu_dtype), wo_ref[...],
                      preferred_element_type=jnp.float32) + bo_ref[...]
        o_ref[...] = out.astype(o_ref.dtype)

    return kernel


# ---------------------------------------------------------------------------
# Parameter setup / host-side packing (glue, plain JAX)
# ---------------------------------------------------------------------------
def init_params(key, num_features, layer_sizes, output_size):
    params = {"conv": [], "bn": []}
    in_feats = num_features
    for size in layer_sizes:
        key, k1, k2 = jax.random.split(key, 3)
        # DGL GraphConv weight: (in_feats, out_feats)
        w_c = jax.random.normal(k1, (in_feats, size), jnp.float32) / jnp.sqrt(
            float(in_feats))
        # BiGraphConv.lin: Linear(2*size, size, bias=False); weight (size, 2*size)
        w_lin = jax.random.normal(k2, (size, 2 * size), jnp.float32) / jnp.sqrt(
            float(2 * size))
        l1 = jnp.transpose(w_lin[:, :size])   # (size, size)
        l2 = jnp.transpose(w_lin[:, size:])   # (size, size)
        params["conv"].append({"w_c": w_c, "l1": l1, "l2": l2})
        params["bn"].append({"gamma": jnp.ones((1, size), jnp.float32),
                             "beta": jnp.zeros((1, size), jnp.float32)})
        in_feats = size
    key, k1, k2 = jax.random.split(key, 3)
    w_out = jax.random.normal(k1, (layer_sizes[-1], output_size),
                              jnp.float32) / jnp.sqrt(float(layer_sizes[-1]))
    b_out = jax.random.normal(k2, (1, output_size), jnp.float32) * 0.1
    params["out"] = {"w": w_out, "b": b_out}
    return params


def pack_params(params, num_features, layer_sizes, output_size, mxu_dtype):
    """Fuse (W_conv @ L1/L2), stack over layers as dense (L, C, C) in mxu_dtype."""
    n_layers = len(layer_sizes)
    c = layer_sizes[0]
    w1 = jnp.zeros((n_layers, c, c), jnp.float32)
    w2 = jnp.zeros((n_layers, c, c), jnp.float32)
    gamma = jnp.zeros((n_layers, 1, c), jnp.float32)
    beta = jnp.zeros((n_layers, 1, c), jnp.float32)
    in_feats = num_features
    for i, size in enumerate(layer_sizes):
        cp = params["conv"][i]
        w1 = w1.at[i, :in_feats, :size].set(cp["w_c"] @ cp["l1"])
        w2 = w2.at[i, :in_feats, :size].set(cp["w_c"] @ cp["l2"])
        bp = params["bn"][i]
        gamma = gamma.at[i, :, :size].set(bp["gamma"])
        beta = beta.at[i, :, :size].set(bp["beta"])
        in_feats = size
    w_out = (jnp.zeros((c, OUT_LANES), jnp.float32)
             .at[:layer_sizes[-1], :output_size].set(params["out"]["w"]))
    b_out = (jnp.zeros((1, OUT_LANES), jnp.float32)
             .at[:, :output_size].set(params["out"]["b"]))
    return {"w1": w1.astype(mxu_dtype), "w2": w2.astype(mxu_dtype),
            "gamma": gamma, "beta": beta,
            "w_out": w_out.astype(mxu_dtype), "b_out": b_out}


def build_forward(n_graphs, n_nodes, layer_sizes, output_size,
                  skip_connections=True, mxu_dtype=jnp.bfloat16):
    n_layers = len(layer_sizes)
    c = layer_sizes[0]
    assert all(s == c for s in layer_sizes)
    skip_src = {i: i - 2 for i, s in enumerate(layer_sizes)
                if skip_connections and i >= 2 and s == layer_sizes[i - 2]}
    kernel = _make_gcn_kernel(n_layers, n_nodes, c, skip_src, mxu_dtype)

    const3 = lambda g: (0, 0, 0)
    const2 = lambda g: (0, 0)
    in_specs = [
        pl.BlockSpec((None, n_nodes, c), lambda g: (g, 0, 0)),            # x
        pl.BlockSpec((None, n_nodes, 2 * n_nodes), lambda g: (g, 0, 0)),  # [A|A^T]
        pl.BlockSpec((n_layers, c, c), const3),        # W1 stack  (resident)
        pl.BlockSpec((n_layers, c, c), const3),        # W2 stack  (resident)
        pl.BlockSpec((n_layers, 1, c), const3),        # gamma     (resident)
        pl.BlockSpec((n_layers, 1, c), const3),        # beta      (resident)
        pl.BlockSpec((c, OUT_LANES), const2),          # W_out     (resident)
        pl.BlockSpec((1, OUT_LANES), const2),          # b_out     (resident)
    ]
    out_spec = pl.BlockSpec((None, n_nodes, OUT_LANES), lambda g: (g, 0, 0))

    def forward(packed, a_cat, features):
        g_, n, f = features.shape
        x = jnp.zeros((g_, n, c), jnp.float32).at[..., :f].set(features)
        out = pl.pallas_call(
            kernel,
            grid=(n_graphs,),
            out_shape=jax.ShapeDtypeStruct((n_graphs, n_nodes, OUT_LANES),
                                           jnp.float32),
            in_specs=in_specs,
            out_specs=out_spec,
            scratch_shapes=[pltpu.VMEM((2 * n_nodes, c), mxu_dtype)],
            compiler_params=pltpu.CompilerParams(
                dimension_semantics=("parallel",)),
        )(x, a_cat.astype(mxu_dtype),
          packed["w1"], packed["w2"], packed["gamma"], packed["beta"],
          packed["w_out"], packed["b_out"])
        return out[..., :output_size]

    return jax.jit(forward)


# ---------------------------------------------------------------------------
# Pure-JAX reference (identical math, un-fused / un-padded, f32) per graph
# ---------------------------------------------------------------------------
def gcn_reference(params, a_hat, features, layer_sizes, skip_connections=True):
    x = features
    saved = {}
    a_hat_t = a_hat.T
    n_layers = len(layer_sizes)
    for i, size in enumerate(layer_sizes):
        is_last = i == n_layers - 1
        has_skip = skip_connections and i >= 2 and size == layer_sizes[i - 2]
        cp = params["conv"][i]
        bp = params["bn"][i]
        xw = x @ cp["w_c"]
        x = (a_hat @ xw) @ cp["l1"] + (a_hat_t @ xw) @ cp["l2"]
        skip = saved[i - 2] if has_skip else 0.0
        if is_last:
            x = x + skip
        mean = jnp.mean(x, axis=0, keepdims=True)
        var = jnp.mean(jnp.square(x - mean), axis=0, keepdims=True)
        x = (x - mean) * jax.lax.rsqrt(var + EPS_BN) * bp["gamma"] + bp["beta"]
        if not is_last:
            x = x + skip
            x = jnp.maximum(x, 0.0)
        saved[i] = x
    return x @ params["out"]["w"] + params["out"]["b"]


if __name__ == "__main__":
    key = jax.random.PRNGKey(0)
    G, N, F = 4, 16, 8                 # graphs, nodes per graph, input features
    layer_sizes = (32, 32, 32, 32, 32)
    output_size = 1

    key, k_adj, k_feat, k_par = jax.random.split(key, 4)

    # Deterministic random directed graphs (dense adjacency A[dst, src]).
    adj = jax.random.bernoulli(k_adj, 0.3, (G, N, N)).astype(jnp.float32)
    adj = adj * (1.0 - jnp.eye(N, dtype=jnp.float32))          # no self-loops
    d_in = jnp.maximum(adj.sum(axis=2), 1.0)                   # (G, N)
    d_out = jnp.maximum(adj.sum(axis=1), 1.0)                  # (G, N)
    a_hat = (d_in ** -0.5)[:, :, None] * adj * (d_out ** -0.5)[:, None, :]
    a_cat = jnp.concatenate([a_hat, jnp.swapaxes(a_hat, 1, 2)], axis=2)  # (G,N,2N)

    features = jax.random.normal(k_feat, (G, N, F), jnp.float32)
    params = init_params(k_par, F, layer_sizes, output_size)

    ref = jnp.stack([gcn_reference(params, a_hat[g], features[g], layer_sizes)
                     for g in range(G)])

    # f32 MXU variant: tight check of the fused kernel math.
    fwd_f32 = build_forward(G, N, layer_sizes, output_size,
                            mxu_dtype=jnp.float32)
    packed_f32 = pack_params(params, F, layer_sizes, output_size, jnp.float32)
    out_f32 = jax.block_until_ready(fwd_f32(packed_f32, a_cat, features))
    assert out_f32.shape == (G, N, output_size), out_f32.shape
    assert jnp.allclose(out_f32, ref, rtol=1e-3, atol=1e-3)

    # bf16 MXU fast path (per perf review). The kernel code path is identical to
    # the f32 variant verified above at 1e-3; the looser tolerance here only
    # covers bf16 operand quantization propagated through 5 BatchNorm layers
    # (observed ~1e-2 level).
    fwd_bf16 = build_forward(G, N, layer_sizes, output_size,
                             mxu_dtype=jnp.bfloat16)
    packed_bf16 = pack_params(params, F, layer_sizes, output_size, jnp.bfloat16)
    out_bf16 = jax.block_until_ready(fwd_bf16(packed_bf16, a_cat, features))
    assert out_bf16.shape == (G, N, output_size), out_bf16.shape
    assert jnp.allclose(out_bf16, ref, rtol=1e-1, atol=1e-1)

    print("KERNEL_OK")
</pallas_src>

<mosaic_0001>
module attributes {stable_mosaic.version = 11 : i64} {
  func.func @kernel(%arg0: i32, %arg1: memref<1x16x32xf32, #tpu.memory_space<vmem>>, %arg2: memref<1x16x32xf32, #tpu.memory_space<vmem>>, %arg3: memref<5x32x32xf32, #tpu.memory_space<vmem>>, %arg4: memref<5x32x32xf32, #tpu.memory_space<vmem>>, %arg5: memref<5x1x32xf32, #tpu.memory_space<vmem>>, %arg6: memref<5x1x32xf32, #tpu.memory_space<vmem>>, %arg7: memref<32x128xf32, #tpu.memory_space<vmem>>, %arg8: memref<1x128xf32, #tpu.memory_space<vmem>>, %arg9: memref<1x16x128xf32, #tpu.memory_space<vmem>>, %arg10: memref<32x32xf32, #tpu.memory_space<vmem>>) attributes {dimension_semantics = [#tpu.dimension_semantics<parallel>], iteration_bounds = array<i64: 4>, scalar_prefetch = 0 : i64, scratch_operands = 1 : i64, tpu.core_type = #tpu.core_type<tc>, window_params = [{transform_indices = @transform_0, window_bounds = array<i64: 1, 16, 32>}, {transform_indices = @transform_1, window_bounds = array<i64: 1, 16, 32>}, {pipeline_mode = #tpu.pipeline_mode<synchronous>, transform_indices = @transform_2, window_bounds = array<i64: 5, 32, 32>}, {pipeline_mode = #tpu.pipeline_mode<synchronous>, transform_indices = @transform_3, window_bounds = array<i64: 5, 32, 32>}, {pipeline_mode = #tpu.pipeline_mode<synchronous>, transform_indices = @transform_4, window_bounds = array<i64: 5, 1, 32>}, {pipeline_mode = #tpu.pipeline_mode<synchronous>, transform_indices = @transform_5, window_bounds = array<i64: 5, 1, 32>}, {pipeline_mode = #tpu.pipeline_mode<synchronous>, transform_indices = @transform_6, window_bounds = array<i64: 32, 128>}, {pipeline_mode = #tpu.pipeline_mode<synchronous>, transform_indices = @transform_7, window_bounds = array<i64: 1, 128>}, {transform_indices = @transform_8, window_bounds = array<i64: 1, 16, 128>}]} {
    %c0 = arith.constant 0 : index
    %c0_0 = arith.constant 0 : index
    %c0_1 = arith.constant 0 : index
    %0 = vector.load %arg2[%c0, %c0_0, %c0_1] : memref<1x16x32xf32, #tpu.memory_space<vmem>>, vector<1x16x32xf32>
    %1 = vector.shape_cast %0 : vector<1x16x32xf32> to vector<16x32xf32>
    %c0_2 = arith.constant 0 : index
    %c0_3 = arith.constant 0 : index
    %c0_4 = arith.constant 0 : index
    %2 = vector.load %arg1[%c0_2, %c0_3, %c0_4] : memref<1x16x32xf32, #tpu.memory_space<vmem>>, vector<1x16x32xf32>
    %3 = vector.shape_cast %2 : vector<1x16x32xf32> to vector<16x32xf32>
    %c0_5 = arith.constant 0 : index
    %c0_6 = arith.constant 0 : index
    %c0_7 = arith.constant 0 : index
    %4 = vector.load %arg3[%c0_5, %c0_6, %c0_7] : memref<5x32x32xf32, #tpu.memory_space<vmem>>, vector<1x32x32xf32>
    %5 = vector.shape_cast %4 : vector<1x32x32xf32> to vector<32x32xf32>
    %cst = arith.constant dense<0.000000e+00> : vector<16x32xf32>
    %6 = tpu.matmul %3, %5, %cst {dimension_numbers = #tpu.dot_dimension_numbers<[1], [0], [0], [1], [0, 0, 1, 1], [], []>} : vector<16x32xf32>, vector<32x32xf32>, vector<16x32xf32> -> vector<16x32xf32>
    %c0_8 = arith.constant 0 : index
    %c0_9 = arith.constant 0 : index
    %c0_10 = arith.constant 0 : index
    %7 = vector.load %arg4[%c0_8, %c0_9, %c0_10] : memref<5x32x32xf32, #tpu.memory_space<vmem>>, vector<1x32x32xf32>
    %8 = vector.shape_cast %7 : vector<1x32x32xf32> to vector<32x32xf32>
    %cst_11 = arith.constant dense<0.000000e+00> : vector<16x32xf32>
    %9 = tpu.matmul %3, %8, %cst_11 {dimension_numbers = #tpu.dot_dimension_numbers<[1], [0], [0], [1], [0, 0, 1, 1], [], []>} : vector<16x32xf32>, vector<32x32xf32>, vector<16x32xf32> -> vector<16x32xf32>
    %c0_12 = arith.constant 0 : index
    %c0_13 = arith.constant 0 : index
    %10 = vector.load %arg10[%c0_12, %c0_13] : memref<32x32xf32, #tpu.memory_space<vmem>>, vector<16x32xf32>
    tpu.vector_store %arg10[%c0_12, %c0_13], %6 {strides = array<i32>} : memref<32x32xf32, #tpu.memory_space<vmem>>, vector<16x32xf32>,
    %c16 = arith.constant 16 : index
    %c0_14 = arith.constant 0 : index
    %11 = vector.load %arg10[%c16, %c0_14] : memref<32x32xf32, #tpu.memory_space<vmem>>, vector<16x32xf32>
    tpu.vector_store %arg10[%c16, %c0_14], %9 {strides = array<i32>} : memref<32x32xf32, #tpu.memory_space<vmem>>, vector<16x32xf32>,
    %c0_15 = arith.constant 0 : index
    %c0_16 = arith.constant 0 : index
    %12 = vector.load %arg10[%c0_15, %c0_16] : memref<32x32xf32, #tpu.memory_space<vmem>>, vector<32x32xf32>
    %cst_17 = arith.constant dense<0.000000e+00> : vector<16x32xf32>
    %13 = tpu.matmul %1, %12, %cst_17 {dimension_numbers = #tpu.dot_dimension_numbers<[1], [0], [0], [1], [0, 0, 1, 1], [], []>} : vector<16x32xf32>, vector<32x32xf32>, vector<16x32xf32> -> vector<16x32xf32>
    %cst_18 = arith.constant dense<0.000000e+00> : vector<32xf32>
    %14 = vector.multi_reduction <add>, %13, %cst_18 [0] : vector<16x32xf32> to vector<32xf32>
    %15 = vector.shape_cast %14 : vector<32xf32> to vector<1x32xf32>
    %cst_19 = arith.constant 1.600000e+01 : f32
    %16 = vector.broadcast %cst_19 : f32 to vector<1x32xf32>
    %17 = arith.divf %15, %16 : vector<1x32xf32>
    %18 = vector.broadcast %17 : vector<1x32xf32> to vector<16x32xf32>
    %19 = arith.subf %13, %18 : vector<16x32xf32>
    %20 = arith.mulf %19, %19 : vector<16x32xf32>
    %cst_20 = arith.constant dense<0.000000e+00> : vector<32xf32>
    %21 = vector.multi_reduction <add>, %20, %cst_20 [0] : vector<16x32xf32> to vector<32xf32>
    %22 = vector.shape_cast %21 : vector<32xf32> to vector<1x32xf32>
    %cst_21 = arith.constant 1.600000e+01 : f32
    %23 = vector.broadcast %cst_21 : f32 to vector<1x32xf32>
    %24 = arith.divf %22, %23 : vector<1x32xf32>
    %c0_22 = arith.constant 0 : index
    %c0_23 = arith.constant 0 : index
    %c0_24 = arith.constant 0 : index
    %25 = vector.load %arg5[%c0_22, %c0_23, %c0_24] : memref<5x1x32xf32, #tpu.memory_space<vmem>>, vector<1x1x32xf32>
    %26 = vector.shape_cast %25 : vector<1x1x32xf32> to vector<1x32xf32>
    %cst_25 = arith.constant 9.99999974E-6 : f32
    %27 = vector.broadcast %cst_25 : f32 to vector<1x32xf32>
    %28 = arith.addf %24, %27 : vector<1x32xf32>
    %29 = math.rsqrt %28 : vector<1x32xf32>
    %30 = arith.mulf %26, %29 : vector<1x32xf32>
    %c0_26 = arith.constant 0 : index
    %c0_27 = arith.constant 0 : index
    %c0_28 = arith.constant 0 : index
    %31 = vector.load %arg6[%c0_26, %c0_27, %c0_28] : memref<5x1x32xf32, #tpu.memory_space<vmem>>, vector<1x1x32xf32>
    %32 = vector.shape_cast %31 : vector<1x1x32xf32> to vector<1x32xf32>
    %33 = arith.mulf %17, %30 : vector<1x32xf32>
    %34 = arith.subf %32, %33 : vector<1x32xf32>
    %35 = vector.broadcast %30 : vector<1x32xf32> to vector<16x32xf32>
    %36 = arith.mulf %13, %35 : vector<16x32xf32>
    %37 = vector.broadcast %34 : vector<1x32xf32> to vector<16x32xf32>
    %38 = arith.addf %36, %37 : vector<16x32xf32>
    %cst_29 = arith.constant 0.000000e+00 : f32
    %39 = vector.broadcast %cst_29 : f32 to vector<16x32xf32>
    %40 = arith.maximumf %38, %39 : vector<16x32xf32>
    %c1 = arith.constant 1 : index
    %c0_30 = arith.constant 0 : index
    %c0_31 = arith.constant 0 : index
    %41 = vector.load %arg3[%c1, %c0_30, %c0_31] : memref<5x32x32xf32, #tpu.memory_space<vmem>>, vector<1x32x32xf32>
    %42 = vector.shape_cast %41 : vector<1x32x32xf32> to vector<32x32xf32>
    %cst_32 = arith.constant dense<0.000000e+00> : vector<16x32xf32>
    %43 = tpu.matmul %40, %42, %cst_32 {dimension_numbers = #tpu.dot_dimension_numbers<[1], [0], [0], [1], [0, 0, 1, 1], [], []>} : vector<16x32xf32>, vector<32x32xf32>, vector<16x32xf32> -> vector<16x32xf32>
    %c1_33 = arith.constant 1 : index
    %c0_34 = arith.constant 0 : index
    %c0_35 = arith.constant 0 : index
    %44 = vector.load %arg4[%c1_33, %c0_34, %c0_35] : memref<5x32x32xf32, #tpu.memory_space<vmem>>, vector<1x32x32xf32>
    %45 = vector.shape_cast %44 : vector<1x32x32xf32> to vector<32x32xf32>
    %cst_36 = arith.constant dense<0.000000e+00> : vector<16x32xf32>
    %46 = tpu.matmul %40, %45, %cst_36 {dimension_numbers = #tpu.dot_dimension_numbers<[1], [0], [0], [1], [0, 0, 1, 1], [], []>} : vector<16x32xf32>, vector<32x32xf32>, vector<16x32xf32> -> vector<16x32xf32>
    %c0_37 = arith.constant 0 : index
    %c0_38 = arith.constant 0 : index
    %47 = vector.load %arg10[%c0_37, %c0_38] : memref<32x32xf32, #tpu.memory_space<vmem>>, vector<16x32xf32>
    tpu.vector_store %arg10[%c0_37, %c0_38], %43 {strides = array<i32>} : memref<32x32xf32, #tpu.memory_space<vmem>>, vector<16x32xf32>,
    %c16_39 = arith.constant 16 : index
    %c0_40 = arith.constant 0 : index
    %48 = vector.load %arg10[%c16_39, %c0_40] : memref<32x32xf32, #tpu.memory_space<vmem>>, vector<16x32xf32>
    tpu.vector_store %arg10[%c16_39, %c0_40], %46 {strides = array<i32>} : memref<32x32xf32, #tpu.memory_space<vmem>>, vector<16x32xf32>,
    %c0_41 = arith.constant 0 : index
    %c0_42 = arith.constant 0 : index
    %49 = vector.load %arg10[%c0_41, %c0_42] : memref<32x32xf32, #tpu.memory_space<vmem>>, vector<32x32xf32>
    %cst_43 = arith.constant dense<0.000000e+00> : vector<16x32xf32>
    %50 = tpu.matmul %1, %49, %cst_43 {dimension_numbers = #tpu.dot_dimension_numbers<[1], [0], [0], [1], [0, 0, 1, 1], [], []>} : vector<16x32xf32>, vector<32x32xf32>, vector<16x32xf32> -> vector<16x32xf32>
    %cst_44 = arith.constant dense<0.000000e+00> : vector<32xf32>
    %51 = vector.multi_reduction <add>, %50, %cst_44 [0] : vector<16x32xf32> to vector<32xf32>
    %52 = vector.shape_cast %51 : vector<32xf32> to vector<1x32xf32>
    %cst_45 = arith.constant 1.600000e+01 : f32
    %53 = vector.broadcast %cst_45 : f32 to vector<1x32xf32>
    %54 = arith.divf %52, %53 : vector<1x32xf32>
    %55 = vector.broadcast %54 : vector<1x32xf32> to vector<16x32xf32>
    %56 = arith.subf %50, %55 : vector<16x32xf32>
    %57 = arith.mulf %56, %56 : vector<16x32xf32>
    %cst_46 = arith.constant dense<0.000000e+00> : vector<32xf32>
    %58 = vector.multi_reduction <add>, %57, %cst_46 [0] : vector<16x32xf32> to vector<32xf32>
    %59 = vector.shape_cast %58 : vector<32xf32> to vector<1x32xf32>
    %cst_47 = arith.constant 1.600000e+01 : f32
    %60 = vector.broadcast %cst_47 : f32 to vector<1x32xf32>
    %61 = arith.divf %59, %60 : vector<1x32xf32>
    %c1_48 = arith.constant 1 : index
    %c0_49 = arith.constant 0 : index
    %c0_50 = arith.constant 0 : index
    %62 = vector.load %arg5[%c1_48, %c0_49, %c0_50] : memref<5x1x32xf32, #tpu.memory_space<vmem>>, vector<1x1x32xf32>
    %63 = vector.shape_cast %62 : vector<1x1x32xf32> to vector<1x32xf32>
    %cst_51 = arith.constant 9.99999974E-6 : f32
    %64 = vector.broadcast %cst_51 : f32 to vector<1x32xf32>
    %65 = arith.addf %61, %64 : vector<1x32xf32>
    %66 = math.rsqrt %65 : vector<1x32xf32>
    %67 = arith.mulf %63, %66 : vector<1x32xf32>
    %c1_52 = arith.constant 1 : index
    %c0_53 = arith.constant 0 : index
    %c0_54 = arith.constant 0 : index
    %68 = vector.load %arg6[%c1_52, %c0_53, %c0_54] : memref<5x1x32xf32, #tpu.memory_space<vmem>>, vector<1x1x32xf32>
    %69 = vector.shape_cast %68 : vector<1x1x32xf32> to vector<1x32xf32>
    %70 = arith.mulf %54, %67 : vector<1x32xf32>
    %71 = arith.subf %69, %70 : vector<1x32xf32>
    %72 = vector.broadcast %67 : vector<1x32xf32> to vector<16x32xf32>
    %73 = arith.mulf %50, %72 : vector<16x32xf32>
    %74 = vector.broadcast %71 : vector<1x32xf32> to vector<16x32xf32>
    %75 = arith.addf %73, %74 : vector<16x32xf32>
    %cst_55 = arith.constant 0.000000e+00 : f32
    %76 = vector.broadcast %cst_55 : f32 to vector<16x32xf32>
    %77 = arith.maximumf %75, %76 : vector<16x32xf32>
    %c2 = arith.constant 2 : index
    %c0_56 = arith.constant 0 : index
    %c0_57 = arith.constant 0 : index
    %78 = vector.load %arg3[%c2, %c0_56, %c0_57] : memref<5x32x32xf32, #tpu.memory_space<vmem>>, vector<1x32x32xf32>
    %79 = vector.shape_cast %78 : vector<1x32x32xf32> to vector<32x32xf32>
    %cst_58 = arith.constant dense<0.000000e+00> : vector<16x32xf32>
    %80 = tpu.matmul %77, %79, %cst_58 {dimension_numbers = #tpu.dot_dimension_numbers<[1], [0], [0], [1], [0, 0, 1, 1], [], []>} : vector<16x32xf32>, vector<32x32xf32>, vector<16x32xf32> -> vector<16x32xf32>
    %c2_59 = arith.constant 2 : index
    %c0_60 = arith.constant 0 : index
    %c0_61 = arith.constant 0 : index
    %81 = vector.load %arg4[%c2_59, %c0_60, %c0_61] : memref<5x32x32xf32, #tpu.memory_space<vmem>>, vector<1x32x32xf32>
    %82 = vector.shape_cast %81 : vector<1x32x32xf32> to vector<32x32xf32>
    %cst_62 = arith.constant dense<0.000000e+00> : vector<16x32xf32>
    %83 = tpu.matmul %77, %82, %cst_62 {dimension_numbers = #tpu.dot_dimension_numbers<[1], [0], [0], [1], [0, 0, 1, 1], [], []>} : vector<16x32xf32>, vector<32x32xf32>, vector<16x32xf32> -> vector<16x32xf32>
    %c0_63 = arith.constant 0 : index
    %c0_64 = arith.constant 0 : index
    %84 = vector.load %arg10[%c0_63, %c0_64] : memref<32x32xf32, #tpu.memory_space<vmem>>, vector<16x32xf32>
    tpu.vector_store %arg10[%c0_63, %c0_64], %80 {strides = array<i32>} : memref<32x32xf32, #tpu.memory_space<vmem>>, vector<16x32xf32>,
    %c16_65 = arith.constant 16 : index
    %c0_66 = arith.constant 0 : index
    %85 = vector.load %arg10[%c16_65, %c0_66] : memref<32x32xf32, #tpu.memory_space<vmem>>, vector<16x32xf32>
    tpu.vector_store %arg10[%c16_65, %c0_66], %83 {strides = array<i32>} : memref<32x32xf32, #tpu.memory_space<vmem>>, vector<16x32xf32>,
    %c0_67 = arith.constant 0 : index
    %c0_68 = arith.constant 0 : index
    %86 = vector.load %arg10[%c0_67, %c0_68] : memref<32x32xf32, #tpu.memory_space<vmem>>, vector<32x32xf32>
    %cst_69 = arith.constant dense<0.000000e+00> : vector<16x32xf32>
    %87 = tpu.matmul %1, %86, %cst_69 {dimension_numbers = #tpu.dot_dimension_numbers<[1], [0], [0], [1], [0, 0, 1, 1], [], []>} : vector<16x32xf32>, vector<32x32xf32>, vector<16x32xf32> -> vector<16x32xf32>
    %cst_70 = arith.constant dense<0.000000e+00> : vector<32xf32>
    %88 = vector.multi_reduction <add>, %87, %cst_70 [0] : vector<16x32xf32> to vector<32xf32>
    %89 = vector.shape_cast %88 : vector<32xf32> to vector<1x32xf32>
    %cst_71 = arith.constant 1.600000e+01 : f32
    %90 = vector.broadcast %cst_71 : f32 to vector<1x32xf32>
    %91 = arith.divf %89, %90 : vector<1x32xf32>
    %92 = vector.broadcast %91 : vector<1x32xf32> to vector<16x32xf32>
    %93 = arith.subf %87, %92 : vector<16x32xf32>
    %94 = arith.mulf %93, %93 : vector<16x32xf32>
    %cst_72 = arith.constant dense<0.000000e+00> : vector<32xf32>
    %95 = vector.multi_reduction <add>, %94, %cst_72 [0] : vector<16x32xf32> to vector<32xf32>
    %96 = vector.shape_cast %95 : vector<32xf32> to vector<1x32xf32>
    %cst_73 = arith.constant 1.600000e+01 : f32
    %97 = vector.broadcast %cst_73 : f32 to vector<1x32xf32>
    %98 = arith.divf %96, %97 : vector<1x32xf32>
    %c2_74 = arith.constant 2 : index
    %c0_75 = arith.constant 0 : index
    %c0_76 = arith.constant 0 : index
    %99 = vector.load %arg5[%c2_74, %c0_75, %c0_76] : memref<5x1x32xf32, #tpu.memory_space<vmem>>, vector<1x1x32xf32>
    %100 = vector.shape_cast %99 : vector<1x1x32xf32> to vector<1x32xf32>
    %cst_77 = arith.constant 9.99999974E-6 : f32
    %101 = vector.broadcast %cst_77 : f32 to vector<1x32xf32>
    %102 = arith.addf %98, %101 : vector<1x32xf32>
    %103 = math.rsqrt %102 : vector<1x32xf32>
    %104 = arith.mulf %100, %103 : vector<1x32xf32>
    %c2_78 = arith.constant 2 : index
    %c0_79 = arith.constant 0 : index
    %c0_80 = arith.constant 0 : index
    %105 = vector.load %arg6[%c2_78, %c0_79, %c0_80] : memref<5x1x32xf32, #tpu.memory_space<vmem>>, vector<1x1x32xf32>
    %106 = vector.shape_cast %105 : vector<1x1x32xf32> to vector<1x32xf32>
    %107 = arith.mulf %91, %104 : vector<1x32xf32>
    %108 = arith.subf %106, %107 : vector<1x32xf32>
    %109 = vector.broadcast %104 : vector<1x32xf32> to vector<16x32xf32>
    %110 = arith.mulf %87, %109 : vector<16x32xf32>
    %111 = vector.broadcast %108 : vector<1x32xf32> to vector<16x32xf32>
    %112 = arith.addf %110, %111 : vector<16x32xf32>
    %113 = arith.addf %112, %40 : vector<16x32xf32>
    %cst_81 = arith.constant 0.000000e+00 : f32
    %114 = vector.broadcast %cst_81 : f32 to vector<16x32xf32>
    %115 = arith.maximumf %113, %114 : vector<16x32xf32>
    %c3 = arith.constant 3 : index
    %c0_82 = arith.constant 0 : index
    %c0_83 = arith.constant 0 : index
    %116 = vector.load %arg3[%c3, %c0_82, %c0_83] : memref<5x32x32xf32, #tpu.memory_space<vmem>>, vector<1x32x32xf32>
    %117 = vector.shape_cast %116 : vector<1x32x32xf32> to vector<32x32xf32>
    %cst_84 = arith.constant dense<0.000000e+00> : vector<16x32xf32>
    %118 = tpu.matmul %115, %117, %cst_84 {dimension_numbers = #tpu.dot_dimension_numbers<[1], [0], [0], [1], [0, 0, 1, 1], [], []>} : vector<16x32xf32>, vector<32x32xf32>, vector<16x32xf32> -> vector<16x32xf32>
    %c3_85 = arith.constant 3 : index
    %c0_86 = arith.constant 0 : index
    %c0_87 = arith.constant 0 : index
    %119 = vector.load %arg4[%c3_85, %c0_86, %c0_87] : memref<5x32x32xf32, #tpu.memory_space<vmem>>, vector<1x32x32xf32>
    %120 = vector.shape_cast %119 : vector<1x32x32xf32> to vector<32x32xf32>
    %cst_88 = arith.constant dense<0.000000e+00> : vector<16x32xf32>
    %121 = tpu.matmul %115, %120, %cst_88 {dimension_numbers = #tpu.dot_dimension_numbers<[1], [0], [0], [1], [0, 0, 1, 1], [], []>} : vector<16x32xf32>, vector<32x32xf32>, vector<16x32xf32> -> vector<16x32xf32>
    %c0_89 = arith.constant 0 : index
    %c0_90 = arith.constant 0 : index
    %122 = vector.load %arg10[%c0_89, %c0_90] : memref<32x32xf32, #tpu.memory_space<vmem>>, vector<16x32xf32>
    tpu.vector_store %arg10[%c0_89, %c0_90], %118 {strides = array<i32>} : memref<32x32xf32, #tpu.memory_space<vmem>>, vector<16x32xf32>,
    %c16_91 = arith.constant 16 : index
    %c0_92 = arith.constant 0 : index
    %123 = vector.load %arg10[%c16_91, %c0_92] : memref<32x32xf32, #tpu.memory_space<vmem>>, vector<16x32xf32>
    tpu.vector_store %arg10[%c16_91, %c0_92], %121 {strides = array<i32>} : memref<32x32xf32, #tpu.memory_space<vmem>>, vector<16x32xf32>,
    %c0_93 = arith.constant 0 : index
    %c0_94 = arith.constant 0 : index
    %124 = vector.load %arg10[%c0_93, %c0_94] : memref<32x32xf32, #tpu.memory_space<vmem>>, vector<32x32xf32>
    %cst_95 = arith.constant dense<0.000000e+00> : vector<16x32xf32>
    %125 = tpu.matmul %1, %124, %cst_95 {dimension_numbers = #tpu.dot_dimension_numbers<[1], [0], [0], [1], [0, 0, 1, 1], [], []>} : vector<16x32xf32>, vector<32x32xf32>, vector<16x32xf32> -> vector<16x32xf32>
    %cst_96 = arith.constant dense<0.000000e+00> : vector<32xf32>
    %126 = vector.multi_reduction <add>, %125, %cst_96 [0] : vector<16x32xf32> to vector<32xf32>
    %127 = vector.shape_cast %126 : vector<32xf32> to vector<1x32xf32>
    %cst_97 = arith.constant 1.600000e+01 : f32
    %128 = vector.broadcast %cst_97 : f32 to vector<1x32xf32>
    %129 = arith.divf %127, %128 : vector<1x32xf32>
    %130 = vector.broadcast %129 : vector<1x32xf32> to vector<16x32xf32>
    %131 = arith.subf %125, %130 : vector<16x32xf32>
    %132 = arith.mulf %131, %131 : vector<16x32xf32>
    %cst_98 = arith.constant dense<0.000000e+00> : vector<32xf32>
    %133 = vector.multi_reduction <add>, %132, %cst_98 [0] : vector<16x32xf32> to vector<32xf32>
    %134 = vector.shape_cast %133 : vector<32xf32> to vector<1x32xf32>
    %cst_99 = arith.constant 1.600000e+01 : f32
    %135 = vector.broadcast %cst_99 : f32 to vector<1x32xf32>
    %136 = arith.divf %134, %135 : vector<1x32xf32>
    %c3_100 = arith.constant 3 : index
    %c0_101 = arith.constant 0 : index
    %c0_102 = arith.constant 0 : index
    %137 = vector.load %arg5[%c3_100, %c0_101, %c0_102] : memref<5x1x32xf32, #tpu.memory_space<vmem>>, vector<1x1x32xf32>
    %138 = vector.shape_cast %137 : vector<1x1x32xf32> to vector<1x32xf32>
    %cst_103 = arith.constant 9.99999974E-6 : f32
    %139 = vector.broadcast %cst_103 : f32 to vector<1x32xf32>
    %140 = arith.addf %136, %139 : vector<1x32xf32>
    %141 = math.rsqrt %140 : vector<1x32xf32>
    %142 = arith.mulf %138, %141 : vector<1x32xf32>
    %c3_104 = arith.constant 3 : index
    %c0_105 = arith.constant 0 : index
    %c0_106 = arith.constant 0 : index
    %143 = vector.load %arg6[%c3_104, %c0_105, %c0_106] : memref<5x1x32xf32, #tpu.memory_space<vmem>>, vector<1x1x32xf32>
    %144 = vector.shape_cast %143 : vector<1x1x32xf32> to vector<1x32xf32>
    %145 = arith.mulf %129, %142 : vector<1x32xf32>
    %146 = arith.subf %144, %145 : vector<1x32xf32>
    %147 = vector.broadcast %142 : vector<1x32xf32> to vector<16x32xf32>
    %148 = arith.mulf %125, %147 : vector<16x32xf32>
    %149 = vector.broadcast %146 : vector<1x32xf32> to vector<16x32xf32>
    %150 = arith.addf %148, %149 : vector<16x32xf32>
    %151 = arith.addf %150, %77 : vector<16x32xf32>
    %cst_107 = arith.constant 0.000000e+00 : f32
    %152 = vector.broadcast %cst_107 : f32 to vector<16x32xf32>
    %153 = arith.maximumf %151, %152 : vector<16x32xf32>
    %c4 = arith.constant 4 : index
    %c0_108 = arith.constant 0 : index
    %c0_109 = arith.constant 0 : index
    %154 = vector.load %arg3[%c4, %c0_108, %c0_109] : memref<5x32x32xf32, #tpu.memory_space<vmem>>, vector<1x32x32xf32>
    %155 = vector.shape_cast %154 : vector<1x32x32xf32> to vector<32x32xf32>
    %cst_110 = arith.constant dense<0.000000e+00> : vector<16x32xf32>
    %156 = tpu.matmul %153, %155, %cst_110 {dimension_numbers = #tpu.dot_dimension_numbers<[1], [0], [0], [1], [0, 0, 1, 1], [], []>} : vector<16x32xf32>, vector<32x32xf32>, vector<16x32xf32> -> vector<16x32xf32>
    %c4_111 = arith.constant 4 : index
    %c0_112 = arith.constant 0 : index
    %c0_113 = arith.constant 0 : index
    %157 = vector.load %arg4[%c4_111, %c0_112, %c0_113] : memref<5x32x32xf32, #tpu.memory_space<vmem>>, vector<1x32x32xf32>
    %158 = vector.shape_cast %157 : vector<1x32x32xf32> to vector<32x32xf32>
    %cst_114 = arith.constant dense<0.000000e+00> : vector<16x32xf32>
    %159 = tpu.matmul %153, %158, %cst_114 {dimension_numbers = #tpu.dot_dimension_numbers<[1], [0], [0], [1], [0, 0, 1, 1], [], []>} : vector<16x32xf32>, vector<32x32xf32>, vector<16x32xf32> -> vector<16x32xf32>
    %c0_115 = arith.constant 0 : index
    %c0_116 = arith.constant 0 : index
    %160 = vector.load %arg10[%c0_115, %c0_116] : memref<32x32xf32, #tpu.memory_space<vmem>>, vector<16x32xf32>
    tpu.vector_store %arg10[%c0_115, %c0_116], %156 {strides = array<i32>} : memref<32x32xf32, #tpu.memory_space<vmem>>, vector<16x32xf32>,
    %c16_117 = arith.constant 16 : index
    %c0_118 = arith.constant 0 : index
    %161 = vector.load %arg10[%c16_117, %c0_118] : memref<32x32xf32, #tpu.memory_space<vmem>>, vector<16x32xf32>
    tpu.vector_store %arg10[%c16_117, %c0_118], %159 {strides = array<i32>} : memref<32x32xf32, #tpu.memory_space<vmem>>, vector<16x32xf32>,
    %c0_119 = arith.constant 0 : index
    %c0_120 = arith.constant 0 : index
    %162 = vector.load %arg10[%c0_119, %c0_120] : memref<32x32xf32, #tpu.memory_space<vmem>>, vector<32x32xf32>
    %cst_121 = arith.constant dense<0.000000e+00> : vector<16x32xf32>
    %163 = tpu.matmul %1, %162, %cst_121 {dimension_numbers = #tpu.dot_dimension_numbers<[1], [0], [0], [1], [0, 0, 1, 1], [], []>} : vector<16x32xf32>, vector<32x32xf32>, vector<16x32xf32> -> vector<16x32xf32>
    %164 = arith.addf %163, %115 : vector<16x32xf32>
    %cst_122 = arith.constant dense<0.000000e+00> : vector<32xf32>
    %165 = vector.multi_reduction <add>, %164, %cst_122 [0] : vector<16x32xf32> to vector<32xf32>
    %166 = vector.shape_cast %165 : vector<32xf32> to vector<1x32xf32>
    %cst_123 = arith.constant 1.600000e+01 : f32
    %167 = vector.broadcast %cst_123 : f32 to vector<1x32xf32>
    %168 = arith.divf %166, %167 : vector<1x32xf32>
    %169 = vector.broadcast %168 : vector<1x32xf32> to vector<16x32xf32>
    %170 = arith.subf %164, %169 : vector<16x32xf32>
    %171 = arith.mulf %170, %170 : vector<16x32xf32>
    %cst_124 = arith.constant dense<0.000000e+00> : vector<32xf32>
    %172 = vector.multi_reduction <add>, %171, %cst_124 [0] : vector<16x32xf32> to vector<32xf32>
    %173 = vector.shape_cast %172 : vector<32xf32> to vector<1x32xf32>
    %cst_125 = arith.constant 1.600000e+01 : f32
    %174 = vector.broadcast %cst_125 : f32 to vector<1x32xf32>
    %175 = arith.divf %173, %174 : vector<1x32xf32>
    %c4_126 = arith.constant 4 : index
    %c0_127 = arith.constant 0 : index
    %c0_128 = arith.constant 0 : index
    %176 = vector.load %arg5[%c4_126, %c0_127, %c0_128] : memref<5x1x32xf32, #tpu.memory_space<vmem>>, vector<1x1x32xf32>
    %177 = vector.shape_cast %176 : vector<1x1x32xf32> to vector<1x32xf32>
    %cst_129 = arith.constant 9.99999974E-6 : f32
    %178 = vector.broadcast %cst_129 : f32 to vector<1x32xf32>
    %179 = arith.addf %175, %178 : vector<1x32xf32>
    %180 = math.rsqrt %179 : vector<1x32xf32>
    %181 = arith.mulf %177, %180 : vector<1x32xf32>
    %c4_130 = arith.constant 4 : index
    %c0_131 = arith.constant 0 : index
    %c0_132 = arith.constant 0 : index
    %182 = vector.load %arg6[%c4_130, %c0_131, %c0_132] : memref<5x1x32xf32, #tpu.memory_space<vmem>>, vector<1x1x32xf32>
    %183 = vector.shape_cast %182 : vector<1x1x32xf32> to vector<1x32xf32>
    %184 = arith.mulf %168, %181 : vector<1x32xf32>
    %185 = arith.subf %183, %184 : vector<1x32xf32>
    %186 = vector.broadcast %181 : vector<1x32xf32> to vector<16x32xf32>
    %187 = arith.mulf %164, %186 : vector<16x32xf32>
    %188 = vector.broadcast %185 : vector<1x32xf32> to vector<16x32xf32>
    %189 = arith.addf %187, %188 : vector<16x32xf32>
    %c0_133 = arith.constant 0 : index
    %c0_134 = arith.constant 0 : index
    %190 = vector.load %arg7[%c0_133, %c0_134] : memref<32x128xf32, #tpu.memory_space<vmem>>, vector<32x128xf32>
    %cst_135 = arith.constant dense<0.000000e+00> : vector<16x128xf32>
    %191 = tpu.matmul %189, %190, %cst_135 {dimension_numbers = #tpu.dot_dimension_numbers<[1], [0], [0], [1], [0, 0, 1, 1], [], []>} : vector<16x32xf32>, vector<32x128xf32>, vector<16x128xf32> -> vector<16x128xf32>
    %c0_136 = arith.constant 0 : index
    %c0_137 = arith.constant 0 : index
    %192 = vector.load %arg8[%c0_136, %c0_137] : memref<1x128xf32, #tpu.memory_space<vmem>>, vector<1x128xf32>
    %193 = vector.broadcast %192 : vector<1x128xf32> to vector<16x128xf32>
    %194 = arith.addf %191, %193 : vector<16x128xf32>
    %c0_138 = arith.constant 0 : index
    %c0_139 = arith.constant 0 : index
    %c0_140 = arith.constant 0 : index
    %195 = vector.load %arg9[%c0_138, %c0_139, %c0_140] : memref<1x16x128xf32, #tpu.memory_space<vmem>>, vector<1x16x128xf32>
    %196 = vector.shape_cast %195 : vector<1x16x128xf32> to vector<16x128xf32>
    %197 = vector.shape_cast %194 : vector<16x128xf32> to vector<1x16x128xf32>
    tpu.vector_store %arg9[%c0_138, %c0_139, %c0_140], %197 {strides = array<i32>} : memref<1x16x128xf32, #tpu.memory_space<vmem>>, vector<1x16x128xf32>,
    return
  }
  func.func @transform_0(%arg0: i32) -> (i32, i32, i32) {
    %c0_i32 = arith.constant 0 : i32
    %c0_i32_0 = arith.constant 0 : i32
    %c0_i32_1 = arith.constant 0 : i32
    return %arg0, %c0_i32, %c0_i32_0 : i32, i32, i32
  }
  func.func @transform_1(%arg0: i32) -> (i32, i32, i32) {
    %c0_i32 = arith.constant 0 : i32
    %c0_i32_0 = arith.constant 0 : i32
    %c0_i32_1 = arith.constant 0 : i32
    return %arg0, %c0_i32, %c0_i32_0 : i32, i32, i32
  }
  func.func @transform_2(%arg0: i32) -> (i32, i32, i32) {
    %c0_i32 = arith.constant 0 : i32
    %c0_i32_0 = arith.constant 0 : i32
    %c0_i32_1 = arith.constant 0 : i32
    %c0_i32_2 = arith.constant 0 : i32
    return %c0_i32, %c0_i32_0, %c0_i32_1 : i32, i32, i32
  }
  func.func @transform_3(%arg0: i32) -> (i32, i32, i32) {
    %c0_i32 = arith.constant 0 : i32
    %c0_i32_0 = arith.constant 0 : i32
    %c0_i32_1 = arith.constant 0 : i32
    %c0_i32_2 = arith.constant 0 : i32
    return %c0_i32, %c0_i32_0, %c0_i32_1 : i32, i32, i32
  }
  func.func @transform_4(%arg0: i32) -> (i32, i32, i32) {
    %c0_i32 = arith.constant 0 : i32
    %c0_i32_0 = arith.constant 0 : i32
    %c0_i32_1 = arith.constant 0 : i32
    %c0_i32_2 = arith.constant 0 : i32
    return %c0_i32, %c0_i32_0, %c0_i32_1 : i32, i32, i32
  }
  func.func @transform_5(%arg0: i32) -> (i32, i32, i32) {
    %c0_i32 = arith.constant 0 : i32
    %c0_i32_0 = arith.constant 0 : i32
    %c0_i32_1 = arith.constant 0 : i32
    %c0_i32_2 = arith.constant 0 : i32
    return %c0_i32, %c0_i32_0, %c0_i32_1 : i32, i32, i32
  }
  func.func @transform_6(%arg0: i32) -> (i32, i32) {
    %c0_i32 = arith.constant 0 : i32
    %c0_i32_0 = arith.constant 0 : i32
    %c0_i32_1 = arith.constant 0 : i32
    return %c0_i32, %c0_i32_0 : i32, i32
  }
  func.func @transform_7(%arg0: i32) -> (i32, i32) {
    %c0_i32 = arith.constant 0 : i32
    %c0_i32_0 = arith.constant 0 : i32
    %c0_i32_1 = arith.constant 0 : i32
    return %c0_i32, %c0_i32_0 : i32, i32
  }
  func.func @transform_8(%arg0: i32) -> (i32, i32, i32) {
    %c0_i32 = arith.constant 0 : i32
    %c0_i32_0 = arith.constant 0 : i32
    %c0_i32_1 = arith.constant 0 : i32
    return %arg0, %c0_i32, %c0_i32_0 : i32, i32, i32
  }
}

</mosaic_0001>

<llo_original>
// kernel: forward.1
$region0: #{forward.1}
  #allocation0 [shape = 'u32[]', space=smem, size = 0x4, offset = 0x4, fixed_abs, tag = 'smem constant byte address 0x4 - core index']
  #allocation1 [shape = 'u32[144,128]{1,0:T(1,128)}', space=vmem, size = 0x12000, scoped, tag = 'internal scratch']
  #allocation2 [shape = 'f32[32,32]{1,0:T(8,128)}', space=vmem, size = 0x4000, scoped, tag = 'scratch operand']
  %s0 = inlined_call_operand.vmem [shape: f32[4,16,32], index: 0, kind: input, shape index: {}]
  %s1 = inlined_call_operand.vmem [shape: f32[4,16,32], index: 1, kind: input, shape index: {}]
  %s2 = inlined_call_operand.vmem [shape: f32[5,32,32], index: 2, kind: input, shape index: {}]
  %s3 = inlined_call_operand.hbm [shape: f32[5,32,32], index: 3, kind: input, shape index: {}]
  %s4 = inlined_call_operand.vmem [shape: f32[5,1,32], index: 4, kind: input, shape index: {}]
  %s5 = inlined_call_operand.vmem [shape: f32[5,1,32], index: 5, kind: input, shape index: {}]
  %s6 = inlined_call_operand.hbm [shape: f32[32,128], index: 6, kind: input, shape index: {}]
  %s7 = inlined_call_operand.vmem [shape: f32[1,128], index: 7, kind: input, shape index: {}]
  %s8 = inlined_call_operand.vmem [shape: f32[4,16,128], index: 8, kind: output, shape index: {}]
  %s9 = sld [smem:[#allocation0]]
  $region73: #{forward.1} parent=0
    _
  %s11 = ssub.s32 1, %s9
  %s12 = scalar_select 0, %s11, %s9
  $region1: #{forward.1} parent=0
    #allocation3 [shape = 'u8[81920]{0}', space=vmem, size = 0x14000, scoped, tag = 'input window, operand 3, single buffered']
    #allocation4 [shape = 's32[2]{0}', space=sflag, size = 0x8, scoped, tag = 'scoped memory for forward.1']
    #allocation5 [shape = 'u8[16384]{0}', space=vmem, size = 0x4000, scoped, tag = 'input window, operand 6, single buffered']
    #allocation6 [shape = 's32[1]{0}', space=sflag, size = 0x4, scoped, tag = 'scoped memory for forward.1']
    %13 = vsyncpa [#allocation4], 0
    %14 = vsyncpa [#allocation6], 0
    loop: start=0, step=1, limit=6
    $region2: #{forward.1} parent=1 // loop_pre_header
      _
    $region3: #{forward.1} parent=1 // loop_header
      %s16 = sphi 0, %s20
      %p17 = scmp.ge.s32.totalorder %s16, 6
      %s26 = sphi 0, %s28
      %s29 = sphi 0, %s26
      %s30 = sphi 0, %s29
      %s46 = sphi 0, %s30
      %s52 = sphi 0, %s54
      %s55 = sphi 0, %s52
      %s56 = sphi 0, %s55
      %s72 = sphi 0, %s56
      %s76 = sphi 0, %s76
      %s78 = sphi 0, %s76
      %s79 = sphi 0, %s78
      %s93 = sphi 0, %s79
      %s97 = sphi 0, %s97
      %s99 = sphi 0, %s97
      %s100 = sphi 0, %s99
      %s114 = sphi 0, %s100
      %s118 = sphi 0, %s118
      %s120 = sphi 0, %s118
      %s121 = sphi 0, %s120
      %s135 = sphi 0, %s121
      %s139 = sphi 0, %s139
      %s141 = sphi 0, %s139
      %s142 = sphi 0, %s141
      %s156 = sphi 0, %s142
      %s160 = sphi 0, %s160
      %s162 = sphi 0, %s160
      %s163 = sphi 0, %s162
      %s177 = sphi 0, %s163
      %s181 = sphi 0, %s181
      %s183 = sphi 0, %s181
      %s184 = sphi 0, %s183
      %s198 = sphi 0, %s184
      %s204 = sphi 0, %s206
      %s207 = sphi 0, %s204
      %s208 = sphi 0, %s207
      %s224 = sphi 0, %s208
    $region4: #{forward.1} parent=1 // loop_header_branch
      %19 = sbr.rel (%p17) target = $region8
    $region5: #{forward.1} parent=1 // loop_body
      %s21 = ssub.s32 %s16, 1
      %s22 = ssub.s32 %s16, 2
      %s23 = sadd.s32 %s16, 1
      %s24 = ssub.s32 %s16, %s23
      %p25 = scmp.eq.s32.totalorder %s24, 0
      %s27 = sadd.s32 %s26, 1
      %s28 = scalar_select %p25, %s26, %s27
      %p31 = pneg %p25
      %p32 = scmp.eq.s32.totalorder %s16, 3
      %p33 = por %p31, %p32
      %p34 = scmp.ne.s32.totalorder %s26, %s29
      %p35 = scmp.eq.s32.totalorder %s16, 0
      %p36 = por %p34, %p35
      %p37 = scmp.ne.s32.totalorder %s26, %s29
      %p38 = scmp.eq.s32.totalorder %s21, 3
      %p39 = por %p37, %p38
      %p40 = scmp.ne.s32.totalorder %s29, %s30
      %p41 = scmp.eq.s32.totalorder %s21, 0
      %p42 = por %p40, %p41
      %p43 = scmp.ne.s32.totalorder %s29, %s30
      %p44 = scmp.eq.s32.totalorder %s22, 3
      %p45 = por %p43, %p44
      %p47 = scmp.ne.s32.totalorder %s30, %s46
      %p48 = scmp.eq.s32.totalorder %s22, 0
      %p49 = por %p47, %p48
      %s50 = ssub.s32 %s16, %s23
      %p51 = scmp.eq.s32.totalorder %s50, 0
      %s53 = sadd.s32 %s52, 1
      %s54 = scalar_select %p51, %s52, %s53
      %p57 = pneg %p51
      %p58 = scmp.eq.s32.totalorder %s16, 3
      %p59 = por %p57, %p58
      %p60 = scmp.ne.s32.totalorder %s52, %s55
      %p61 = scmp.eq.s32.totalorder %s16, 0
      %p62 = por %p60, %p61
      %p63 = scmp.ne.s32.totalorder %s52, %s55
      %p64 = scmp.eq.s32.totalorder %s21, 3
      %p65 = por %p63, %p64
      %p66 = scmp.ne.s32.totalorder %s55, %s56
      %p67 = scmp.eq.s32.totalorder %s21, 0
      %p68 = por %p66, %p67
      %p69 = scmp.ne.s32.totalorder %s55, %s56
      %p70 = scmp.eq.s32.totalorder %s22, 3
      %p71 = por %p69, %p70
      %p73 = scmp.ne.s32.totalorder %s56, %s72
      %p74 = scmp.eq.s32.totalorder %s22, 0
      %p75 = por %p73, %p74
      %s77 = sadd.s32 %s76, 1
      %p80 = scmp.eq.s32.totalorder %s16, 3
      %p81 = scmp.ne.s32.totalorder %s76, %s78
      %p82 = scmp.eq.s32.totalorder %s16, 0
      %p83 = por %p81, %p82
      %p84 = scmp.ne.s32.totalorder %s76, %s78
      %p85 = scmp.eq.s32.totalorder %s21, 3
      %p86 = por %p84, %p85
      %p87 = scmp.ne.s32.totalorder %s78, %s79
      %p88 = scmp.eq.s32.totalorder %s21, 0
      %p89 = por %p87, %p88
      %p90 = scmp.ne.s32.totalorder %s78, %s79
      %p91 = scmp.eq.s32.totalorder %s22, 3
      %p92 = por %p90, %p91
      %p94 = scmp.ne.s32.totalorder %s79, %s93
      %p95 = scmp.eq.s32.totalorder %s22, 0
      %p96 = por %p94, %p95
      %s98 = sadd.s32 %s97, 1
      %p101 = scmp.eq.s32.totalorder %s16, 3
      %p102 = scmp.ne.s32.totalorder %s97, %s99
      %p103 = scmp.eq.s32.totalorder %s16, 0
      %p104 = por %p102, %p103
      %p105 = scmp.ne.s32.totalorder %s97, %s99
      %p106 = scmp.eq.s32.totalorder %s21, 3
      %p107 = por %p105, %p106
      %p108 = scmp.ne.s32.totalorder %s99, %s100
      %p109 = scmp.eq.s32.totalorder %s21, 0
      %p110 = por %p108, %p109
      %p111 = scmp.ne.s32.totalorder %s99, %s100
      %p112 = scmp.eq.s32.totalorder %s22, 3
      %p113 = por %p111, %p112
      %p115 = scmp.ne.s32.totalorder %s100, %s114
      %p116 = scmp.eq.s32.totalorder %s22, 0
      %p117 = por %p115, %p116
      %s119 = sadd.s32 %s118, 1
      %p122 = scmp.eq.s32.totalorder %s16, 3
      %p123 = scmp.ne.s32.totalorder %s118, %s120
      %p124 = scmp.eq.s32.totalorder %s16, 0
      %p125 = por %p123, %p124
      %p126 = scmp.ne.s32.totalorder %s118, %s120
      %p127 = scmp.eq.s32.totalorder %s21, 3
      %p128 = por %p126, %p127
      %p129 = scmp.ne.s32.totalorder %s120, %s121
      %p130 = scmp.eq.s32.totalorder %s21, 0
      %p131 = por %p129, %p130
      %p132 = scmp.ne.s32.totalorder %s120, %s121
      %p133 = scmp.eq.s32.totalorder %s22, 3
      %p134 = por %p132, %p133
      %p136 = scmp.ne.s32.totalorder %s121, %s135
      %p137 = scmp.eq.s32.totalorder %s22, 0
      %p138 = por %p136, %p137
      %s140 = sadd.s32 %s139, 1
      %p143 = scmp.eq.s32.totalorder %s16, 3
      %p144 = scmp.ne.s32.totalorder %s139, %s141
      %p145 = scmp.eq.s32.totalorder %s16, 0
      %p146 = por %p144, %p145
      %p147 = scmp.ne.s32.totalorder %s139, %s141
      %p148 = scmp.eq.s32.totalorder %s21, 3
      %p149 = por %p147, %p148
      %p150 = scmp.ne.s32.totalorder %s141, %s142
      %p151 = scmp.eq.s32.totalorder %s21, 0
      %p152 = por %p150, %p151
      %p153 = scmp.ne.s32.totalorder %s141, %s142
      %p154 = scmp.eq.s32.totalorder %s22, 3
      %p155 = por %p153, %p154
      %p157 = scmp.ne.s32.totalorder %s142, %s156
      %p158 = scmp.eq.s32.totalorder %s22, 0
      %p159 = por %p157, %p158
      %s161 = sadd.s32 %s160, 1
      %p164 = scmp.eq.s32.totalorder %s16, 3
      %p165 = scmp.ne.s32.totalorder %s160, %s162
      %p166 = scmp.eq.s32.totalorder %s16, 0
      %p167 = por %p165, %p166
      %p168 = scmp.ne.s32.totalorder %s160, %s162
      %p169 = scmp.eq.s32.totalorder %s21, 3
      %p170 = por %p168, %p169
      %p171 = scmp.ne.s32.totalorder %s162, %s163
      %p172 = scmp.eq.s32.totalorder %s21, 0
      %p173 = por %p171, %p172
      %p174 = scmp.ne.s32.totalorder %s162, %s163
      %p175 = scmp.eq.s32.totalorder %s22, 3
      %p176 = por %p174, %p175
      %p178 = scmp.ne.s32.totalorder %s163, %s177
      %p179 = scmp.eq.s32.totalorder %s22, 0
      %p180 = por %p178, %p179
      %s182 = sadd.s32 %s181, 1
      %p185 = scmp.eq.s32.totalorder %s16, 3
      %p186 = scmp.ne.s32.totalorder %s181, %s183
      %p187 = scmp.eq.s32.totalorder %s16, 0
      %p188 = por %p186, %p187
      %p189 = scmp.ne.s32.totalorder %s181, %s183
      %p190 = scmp.eq.s32.totalorder %s21, 3
      %p191 = por %p189, %p190
      %p192 = scmp.ne.s32.totalorder %s183, %s184
      %p193 = scmp.eq.s32.totalorder %s21, 0
      %p194 = por %p192, %p193
      %p195 = scmp.ne.s32.totalorder %s183, %s184
      %p196 = scmp.eq.s32.totalorder %s22, 3
      %p197 = por %p195, %p196
      %p199 = scmp.ne.s32.totalorder %s184, %s198
      %p200 = scmp.eq.s32.totalorder %s22, 0
      %p201 = por %p199, %p200
      %s202 = ssub.s32 %s16, %s23
      %p203 = scmp.eq.s32.totalorder %s202, 0
      %s205 = sadd.s32 %s204, 1
      %s206 = scalar_select %p203, %s204, %s205
      %p209 = pneg %p203
      %p210 = scmp.eq.s32.totalorder %s16, 3
      %p211 = por %p209, %p210
      %p212 = scmp.ne.s32.totalorder %s204, %s207
      %p213 = scmp.eq.s32.totalorder %s16, 0
      %p214 = por %p212, %p213
      %p215 = scmp.ne.s32.totalorder %s204, %s207
      %p216 = scmp.eq.s32.totalorder %s21, 3
      %p217 = por %p215, %p216
      %p218 = scmp.ne.s32.totalorder %s207, %s208
      %p219 = scmp.eq.s32.totalorder %s21, 0
      %p220 = por %p218, %p219
      %p221 = scmp.ne.s32.totalorder %s207, %s208
      %p222 = scmp.eq.s32.totalorder %s22, 3
      %p223 = por %p221, %p222
      %p225 = scmp.ne.s32.totalorder %s208, %s224
      %p226 = scmp.eq.s32.totalorder %s22, 0
      %p227 = por %p225, %p226
      %p228 = scmp.le.s32.totalorder 1, %s16
      %p229 = scmp.lt.s32.totalorder %s16, 5
      %p230 = pnand %p228, %p229
      %p231 = pneg %p230
      // Predicated region
      $region9: #{forward.1} parent=5 // pred_check
        _
      $region10: #{forward.1} parent=5 // pred_check_branch
        %233 = sbr.rel (%p230) target = $region12
      $region11: #{forward.1} parent=5 // pred_region
        %s234 = ssub.s32 %s16, 1
        // Predicated region
        $region13: #{forward.1} parent=11 // pred_check
          %p235 = pneg %p89
        $region14: #{forward.1} parent=11 // pred_check_branch
          %237 = sbr.rel (%p235) target = $region16
        $region15: #{forward.1} parent=11 // pred_region
          _
        $region16: #{forward.1} parent=11 // pred_fallthru
          _
        // Predicated region
        $region17: #{forward.1} parent=11 // pred_check
          %p238 = pneg %p110
        $region18: #{forward.1} parent=11 // pred_check_branch
          %240 = sbr.rel (%p238) target = $region20
        $region19: #{forward.1} parent=11 // pred_region
          %s242 = ssub.s32 2560, 2560
          %243 = vsyncadd [#allocation4], %s242
          %s244 = sshll.u32 [#allocation3], 4
          %s245 = int_to_ptr.vmem [resolvable:$true] %s244
          %250 = dma.hbm_to_vmem [thread:$0]  %s3, 2560, %s245, [#allocation4], 128, 128, 8
        $region20: #{forward.1} parent=11 // pred_fallthru
          _
        // Predicated region
        $region21: #{forward.1} parent=11 // pred_check
          %p251 = pneg %p131
        $region22: #{forward.1} parent=11 // pred_check_branch
          %253 = sbr.rel (%p251) target = $region24
        $region23: #{forward.1} parent=11 // pred_region
          _
        $region24: #{forward.1} parent=11 // pred_fallthru
          _
        // Predicated region
        $region25: #{forward.1} parent=11 // pred_check
          %p254 = pneg %p152
        $region26: #{forward.1} parent=11 // pred_check_branch
          %256 = sbr.rel (%p254) target = $region28
        $region27: #{forward.1} parent=11 // pred_region
          _
        $region28: #{forward.1} parent=11 // pred_fallthru
          _
        // Predicated region
        $region29: #{forward.1} parent=11 // pred_check
          %p257 = pneg %p173
        $region30: #{forward.1} parent=11 // pred_check_branch
          %259 = sbr.rel (%p257) target = $region32
        $region31: #{forward.1} parent=11 // pred_region
          %s261 = ssub.s32 512, 512
          %262 = vsyncadd [#allocation6], %s261
          %s263 = sshll.u32 [#allocation5], 4
          %s264 = int_to_ptr.vmem [resolvable:$true] %s263
          %269 = dma.hbm_to_vmem [thread:$0]  %s6, 512, %s264, [#allocation6], 128, 128, 8
        $region32: #{forward.1} parent=11 // pred_fallthru
          _
        // Predicated region
        $region33: #{forward.1} parent=11 // pred_check
          %p270 = pneg %p194
        $region34: #{forward.1} parent=11 // pred_check_branch
          %272 = sbr.rel (%p270) target = $region36
        $region35: #{forward.1} parent=11 // pred_region
          _
        $region36: #{forward.1} parent=11 // pred_fallthru
          _
      $region12: #{forward.1} parent=5 // pred_fallthru
        _
      %p273 = scmp.lt.s32.totalorder %s16, 4
      // Predicated region
      $region37: #{forward.1} parent=5 // pred_check
        %p274 = pneg %p273
      $region38: #{forward.1} parent=5 // pred_check_branch
        %276 = sbr.rel (%p274) target = $region40
      $region39: #{forward.1} parent=5 // pred_region
        // Predicated region
        $region41: #{forward.1} parent=39 // pred_check
          %p277 = pneg %p36
        $region42: #{forward.1} parent=39 // pred_check_branch
          %279 = sbr.rel (%p277) target = $region44
        $region43: #{forward.1} parent=39 // pred_region
          %p280 = scmp.lt.s32.totalorder %s16, 3
          %s281 = scalar_select %p280, %s16, 3
          %s282 = smul.addr %s281, 2
          %s283 = smul.addr %s282, 8
          %s284 = scalar_lea.vmem %s0, %s283
        $region44: #{forward.1} parent=39 // pred_fallthru
          _
        // Predicated region
        $region45: #{forward.1} parent=39 // pred_check
          %p285 = pneg %p62
        $region46: #{forward.1} parent=39 // pred_check_branch
          %287 = sbr.rel (%p285) target = $region48
        $region47: #{forward.1} parent=39 // pred_region
          %p288 = scmp.lt.s32.totalorder %s16, 3
          %s289 = scalar_select %p288, %s16, 3
          %s290 = smul.addr %s289, 2
          %s291 = smul.addr %s290, 8
          %s292 = scalar_lea.vmem %s1, %s291
        $region48: #{forward.1} parent=39 // pred_fallthru
          _
      $region40: #{forward.1} parent=5 // pred_fallthru
        _
      %p293 = scmp.le.s32.totalorder 1, %s16
      %p294 = scmp.lt.s32.totalorder %s16, 5
      %p295 = pnand %p293, %p294
      %p296 = pneg %p295
      // Predicated region
      $region49: #{forward.1} parent=5 // pred_check
        _
      $region50: #{forward.1} parent=5 // pred_check_branch
        %298 = sbr.rel (%p295) target = $region52
      $region51: #{forward.1} parent=5 // pred_region
        %s299 = ssub.s32 %s16, 1
        // Predicated region
        $region53: #{forward.1} parent=51 // pred_check
          %p300 = pneg %p110
        $region54: #{forward.1} parent=51 // pred_check_branch
          %302 = sbr.rel (%p300) target = $region56
        $region55: #{forward.1} parent=51 // pred_region
          %303 = dma.done [#allocation4], 2560
        $region56: #{forward.1} parent=51 // pred_fallthru
          _
        // Predicated region
        $region57: #{forward.1} parent=51 // pred_check
          %p304 = pneg %p173
        $region58: #{forward.1} parent=51 // pred_check_branch
          %306 = sbr.rel (%p304) target = $region60
        $region59: #{forward.1} parent=51 // pred_region
          %307 = dma.done [#allocation6], 512
        $region60: #{forward.1} parent=51 // pred_fallthru
          _
        %p308 = scmp.lt.s32.totalorder %s21, 3
        %s309 = scalar_select %p308, %s21, 3
        %s310 = smul.addr %s309, 2
        %s311 = smul.addr %s310, 8
        %s312 = scalar_lea.vmem %s0, %s311
        %p313 = pneg %p42
        %p314 = pneg %p39
        %p315 = scmp.lt.s32.totalorder %s21, 3
        %s316 = scalar_select %p315, %s21, 3
        %s317 = smul.addr %s316, 2
        %s318 = smul.addr %s317, 8
        %s319 = scalar_lea.vmem %s1, %s318
        %p320 = pneg %p68
        %p321 = pneg %p65
        %p322 = pneg %p89
        %p323 = pneg %p86
        %p324 = pneg %p110
        %p325 = pneg %p107
        %p326 = pneg %p131
        %p327 = pneg %p128
        %p328 = pneg %p152
        %p329 = pneg %p149
        %p330 = pneg %p173
        %p331 = pneg %p170
        %p332 = pneg %p194
        %p333 = pneg %p191
        %p334 = pneg %p220
        %p335 = pneg %p217
        %p336 = scmp.lt.s32.totalorder %s21, 3
        %s337 = scalar_select %p336, %s21, 3
        %s338 = smul.addr %s337, 2
        %s339 = smul.addr %s338, 8
        %s340 = scalar_lea.vmem %s8, %s339
        %p341 = scmp.lt.s32.totalorder %s21, 3
        %s342 = scalar_select %p341, %s21, 3
        %s343 = smul.addr %s342, 2
        %s344 = smul.addr %s343, 8
        %s345 = scalar_lea.vmem %s0, %s344
        %p346 = scmp.lt.s32.totalorder %s21, 3
        %s347 = scalar_select %p346, %s21, 3
        %s348 = smul.addr %s347, 2
        %s349 = smul.addr %s348, 8
        %s350 = scalar_lea.vmem %s1, %s349
        %p351 = scmp.lt.s32.totalorder %s21, 3
        %s352 = scalar_select %p351, %s21, 3
        %s353 = smul.addr %s352, 2
        %s354 = smul.addr %s353, 8
        %s355 = scalar_lea.vmem %s8, %s354
        %v356 = vld [vmem:[%s350] sm:$0xff]
        %v357 = vld [vmem:[%s350 + $0x8] sm:$0xff]
        %v358 = vld [vmem:[%s345] sm:$0xff]
        %v359 = vld [vmem:[%s345 + $0x8] sm:$0xff]
        %v360 = vld [vmem:[%s2] sm:$0xff]
        %v361 = vld [vmem:[%s2 + $0x8] sm:$0xff]
        %v362 = vld [vmem:[%s2 + $0x10] sm:$0xff]
        %v363 = vld [vmem:[%s2 + $0x18] sm:$0xff]
        %vm364 = vcmask 261120
        %v366 = vsel %vm364, %v358, 0
        %v369 = vsel %vm364, %v359, 0
        %371 = vmatprep.subr.mxu0 0.0
        %372 = vmatpush1.msra.mxu0 %v360
        %373 = vmatprep.subr.mxu0 0.0
        %374 = vmatpush1.msra.mxu0 %v361
        %375 = vmatprep.subr.mxu0 0.0
        %376 = vmatpush1.msra.mxu0 %v362
        %377 = vmatprep.subr.mxu0 0.0
        %378 = vmatpush1.msra.mxu0 %v363
        %379 = vmatprep.subr.mxu0 0.0
        %380 = vmatpush1.msra.mxu0 0.0
        %381 = vmatprep.subr.mxu0 0.0
        %382 = vmatpush1.msra.mxu0 0.0
        %383 = vmatprep.subr.mxu0 0.0
        %384 = vmatpush1.msra.mxu0 0.0
        %385 = vmatprep.subr.mxu0 0.0
        %386 = vmatpush1.msra.mxu0 0.0
        %387 = vmatprep.subr.mxu0 0.0
        %388 = vmatpush1.msra.mxu0 0.0
        %389 = vmatprep.subr.mxu0 0.0
        %390 = vmatpush1.msra.mxu0 0.0
        %391 = vmatprep.subr.mxu0 0.0
        %392 = vmatpush1.msra.mxu0 0.0
        %393 = vmatprep.subr.mxu0 0.0
        %394 = vmatpush1.msra.mxu0 0.0
        %395 = vmatprep.subr.mxu0 0.0
        %396 = vmatpush1.msra.mxu0 0.0
        %397 = vmatprep.subr.mxu0 0.0
        %398 = vmatpush1.msra.mxu0 0.0
        %399 = vmatprep.subr.mxu0 0.0
        %400 = vmatpush1.msra.mxu0 0.0
        %401 = vmatprep.subr.mxu0 0.0
        %402 = vmatpush1.msra.mxu0 0.0
        %403 = vmatprep.subr.mxu0 0.0
        %404 = vmatpush1.msra.mxu0 0.0
        %405 = vmatprep.subr.mxu0 0.0
        %406 = vmatpush1.msra.mxu0 0.0
        %407 = vmatprep.subr.mxu0 0.0
        %408 = vmatpush1.msra.mxu0 0.0
        %409 = vmatprep.subr.mxu0 0.0
        %410 = vmatpush1.msra.mxu0 0.0
        %411 = vmatprep.subr.mxu0 0.0
        %412 = vmatpush1.msra.mxu0 0.0
        %413 = vmatprep.subr.mxu0 0.0
        %414 = vmatpush1.msra.mxu0 0.0
        %415 = vmatprep.subr.mxu0 0.0
        %416 = vmatpush1.msra.mxu0 0.0
        %417 = vmatprep.subr.mxu0 0.0
        %418 = vmatpush1.msra.mxu0 0.0
        %419 = vmatprep.subr.mxu0 0.0
        %420 = vmatpush1.msra.mxu0 0.0
        %421 = vmatprep.subr.mxu0 0.0
        %422 = vmatpush1.msra.mxu0 0.0
        %423 = vmatprep.subr.mxu0 0.0
        %424 = vmatpush1.msra.mxu0 0.0
        %425 = vmatprep.subr.mxu0 0.0
        %426 = vmatpush1.msra.mxu0 0.0
        %427 = vmatprep.subr.mxu0 0.0
        %428 = vmatpush1.msra.mxu0 0.0
        %429 = vmatprep.subr.mxu0 0.0
        %430 = vmatpush1.msra.mxu0 0.0
        %431 = vmatprep.subr.mxu0 0.0
        %432 = vmatpush1.msra.mxu0 0.0
        %433 = vmatprep.subr.mxu0 0.0
        %434 = vmatpush1.msra.mxu0 0.0
        %435 = vmatprep.mubr.f32.mxu0 0.0
        %436 = vmatmul.mubr.f32.gmra.mrb[0].mxu0 %v366
        %v437 = vpop.f32.mrb[0].mxu0
        %v438 = vadd.f32 0.0, %v437
        %v439 = vpop.f32.mrb[0].mxu0
        %440 = vmatprep.mubr.f32.mxu0 0.0
        %441 = vmatmul.mubr.f32.gmra.mrb[0].mxu0 %v369
        %v442 = vpop.f32.mrb[0].mxu0
        %v443 = vadd.f32 0.0, %v442
        %v444 = vpop.f32.mrb[0].mxu0
        %445 = vdwg.mxu0
        %v446 = vld [vmem:[#allocation3] sm:$0xff]
        %v447 = vld [vmem:[#allocation3 + $0x8] sm:$0xff]
        %v448 = vld [vmem:[#allocation3 + $0x10] sm:$0xff]
        %v449 = vld [vmem:[#allocation3 + $0x18] sm:$0xff]
        %450 = vmatprep.subr.mxu0 0.0
        %451 = vmatpush1.msra.mxu0 %v446
        %452 = vmatprep.subr.mxu0 0.0
        %453 = vmatpush1.msra.mxu0 %v447
        %454 = vmatprep.subr.mxu0 0.0
        %455 = vmatpush1.msra.mxu0 %v448
        %456 = vmatprep.subr.mxu0 0.0
        %457 = vmatpush1.msra.mxu0 %v449
        %458 = vmatprep.subr.mxu0 0.0
        %459 = vmatpush1.msra.mxu0 0.0
        %460 = vmatprep.subr.mxu0 0.0
        %461 = vmatpush1.msra.mxu0 0.0
        %462 = vmatprep.subr.mxu0 0.0
        %463 = vmatpush1.msra.mxu0 0.0
        %464 = vmatprep.subr.mxu0 0.0
        %465 = vmatpush1.msra.mxu0 0.0
        %466 = vmatprep.subr.mxu0 0.0
        %467 = vmatpush1.msra.mxu0 0.0
        %468 = vmatprep.subr.mxu0 0.0
        %469 = vmatpush1.msra.mxu0 0.0
        %470 = vmatprep.subr.mxu0 0.0
        %471 = vmatpush1.msra.mxu0 0.0
        %472 = vmatprep.subr.mxu0 0.0
        %473 = vmatpush1.msra.mxu0 0.0
        %474 = vmatprep.subr.mxu0 0.0
        %475 = vmatpush1.msra.mxu0 0.0
        %476 = vmatprep.subr.mxu0 0.0
        %477 = vmatpush1.msra.mxu0 0.0
        %478 = vmatprep.subr.mxu0 0.0
        %479 = vmatpush1.msra.mxu0 0.0
        %480 = vmatprep.subr.mxu0 0.0
        %481 = vmatpush1.msra.mxu0 0.0
        %482 = vmatprep.subr.mxu0 0.0
        %483 = vmatpush1.msra.mxu0 0.0
        %484 = vmatprep.subr.mxu0 0.0
        %485 = vmatpush1.msra.mxu0 0.0
        %486 = vmatprep.subr.mxu0 0.0
        %487 = vmatpush1.msra.mxu0 0.0
        %488 = vmatprep.subr.mxu0 0.0
        %489 = vmatpush1.msra.mxu0 0.0
        %490 = vmatprep.subr.mxu0 0.0
        %491 = vmatpush1.msra.mxu0 0.0
        %492 = vmatprep.subr.mxu0 0.0
        %493 = vmatpush1.msra.mxu0 0.0
        %494 = vmatprep.subr.mxu0 0.0
        %495 = vmatpush1.msra.mxu0 0.0
        %496 = vmatprep.subr.mxu0 0.0
        %497 = vmatpush1.msra.mxu0 0.0
        %498 = vmatprep.subr.mxu0 0.0
        %499 = vmatpush1.msra.mxu0 0.0
        %500 = vmatprep.subr.mxu0 0.0
        %501 = vmatpush1.msra.mxu0 0.0
        %502 = vmatprep.subr.mxu0 0.0
        %503 = vmatpush1.msra.mxu0 0.0
        %504 = vmatprep.subr.mxu0 0.0
        %505 = vmatpush1.msra.mxu0 0.0
        %506 = vmatprep.subr.mxu0 0.0
        %507 = vmatpush1.msra.mxu0 0.0
        %508 = vmatprep.subr.mxu0 0.0
        %509 = vmatpush1.msra.mxu0 0.0
        %510 = vmatprep.subr.mxu0 0.0
        %511 = vmatpush1.msra.mxu0 0.0
        %512 = vmatprep.subr.mxu0 0.0
        %513 = vmatpush1.msra.mxu0 0.0
        %514 = vmatprep.mubr.f32.mxu0 0.0
        %515 = vmatmul.mubr.f32.gmra.mrb[0].mxu0 %v366
        %v516 = vpop.f32.mrb[0].mxu0
        %v517 = vadd.f32 0.0, %v516
        %v518 = vpop.f32.mrb[0].mxu0
        %519 = vmatprep.mubr.f32.mxu0 0.0
        %520 = vmatmul.mubr.f32.gmra.mrb[0].mxu0 %v369
        %v521 = vpop.f32.mrb[0].mxu0
        %v522 = vadd.f32 0.0, %v521
        %v523 = vpop.f32.mrb[0].mxu0
        %524 = vdwg.mxu0
        %525 = vst.msk [vmem:[#allocation2] sm:$0xff] %vm364, %v438
        %526 = vst.msk [vmem:[#allocation2 + $0x8] sm:$0xff] %vm364, %v443
        %527 = vst.msk [vmem:[#allocation2 + $0x10] sm:$0xff] %vm364, %v517
        %528 = vst.msk [vmem:[#allocation2 + $0x18] sm:$0xff] %vm364, %v522
        %v529 = vld [vmem:[#allocation2] sm:$0xff]
        %v530 = vld [vmem:[#allocation2 + $0x8] sm:$0xff]
        %v531 = vld [vmem:[#allocation2 + $0x10] sm:$0xff]
        %v532 = vld [vmem:[#allocation2 + $0x18] sm:$0xff]
        %v534 = vsel %vm364, %v356, 0
        %v537 = vsel %vm364, %v357, 0
        %539 = vmatprep.subr.mxu0 0.0
        %540 = vmatpush1.msra.mxu0 %v529
        %541 = vmatprep.subr.mxu0 0.0
        %542 = vmatpush1.msra.mxu0 %v530
        %543 = vmatprep.subr.mxu0 0.0
        %544 = vmatpush1.msra.mxu0 %v531
        %545 = vmatprep.subr.mxu0 0.0
        %546 = vmatpush1.msra.mxu0 %v532
        %547 = vmatprep.subr.mxu0 0.0
        %548 = vmatpush1.msra.mxu0 0.0
        %549 = vmatprep.subr.mxu0 0.0
        %550 = vmatpush1.msra.mxu0 0.0
        %551 = vmatprep.subr.mxu0 0.0
        %552 = vmatpush1.msra.mxu0 0.0
        %553 = vmatprep.subr.mxu0 0.0
        %554 = vmatpush1.msra.mxu0 0.0
        %555 = vmatprep.subr.mxu0 0.0
        %556 = vmatpush1.msra.mxu0 0.0
        %557 = vmatprep.subr.mxu0 0.0
        %558 = vmatpush1.msra.mxu0 0.0
        %559 = vmatprep.subr.mxu0 0.0
        %560 = vmatpush1.msra.mxu0 0.0
        %561 = vmatprep.subr.mxu0 0.0
        %562 = vmatpush1.msra.mxu0 0.0
        %563 = vmatprep.subr.mxu0 0.0
        %564 = vmatpush1.msra.mxu0 0.0
        %565 = vmatprep.subr.mxu0 0.0
        %566 = vmatpush1.msra.mxu0 0.0
        %567 = vmatprep.subr.mxu0 0.0
        %568 = vmatpush1.msra.mxu0 0.0
        %569 = vmatprep.subr.mxu0 0.0
        %570 = vmatpush1.msra.mxu0 0.0
        %571 = vmatprep.subr.mxu0 0.0
        %572 = vmatpush1.msra.mxu0 0.0
        %573 = vmatprep.subr.mxu0 0.0
        %574 = vmatpush1.msra.mxu0 0.0
        %575 = vmatprep.subr.mxu0 0.0
        %576 = vmatpush1.msra.mxu0 0.0
        %577 = vmatprep.subr.mxu0 0.0
        %578 = vmatpush1.msra.mxu0 0.0
        %579 = vmatprep.subr.mxu0 0.0
        %580 = vmatpush1.msra.mxu0 0.0
        %581 = vmatprep.subr.mxu0 0.0
        %582 = vmatpush1.msra.mxu0 0.0
        %583 = vmatprep.subr.mxu0 0.0
        %584 = vmatpush1.msra.mxu0 0.0
        %585 = vmatprep.subr.mxu0 0.0
        %586 = vmatpush1.msra.mxu0 0.0
        %587 = vmatprep.subr.mxu0 0.0
        %588 = vmatpush1.msra.mxu0 0.0
        %589 = vmatprep.subr.mxu0 0.0
        %590 = vmatpush1.msra.mxu0 0.0
        %591 = vmatprep.subr.mxu0 0.0
        %592 = vmatpush1.msra.mxu0 0.0
        %593 = vmatprep.subr.mxu0 0.0
        %594 = vmatpush1.msra.mxu0 0.0
        %595 = vmatprep.subr.mxu0 0.0
        %596 = vmatpush1.msra.mxu0 0.0
        %597 = vmatprep.subr.mxu0 0.0
        %598 = vmatpush1.msra.mxu0 0.0
        %599 = vmatprep.subr.mxu0 0.0
        %600 = vmatpush1.msra.mxu0 0.0
        %601 = vmatprep.subr.mxu0 0.0
        %602 = vmatpush1.msra.mxu0 0.0
        %603 = vmatprep.mubr.f32.mxu0 0.0
        %604 = vmatmul.mubr.f32.gmra.mrb[0].mxu0 %v534
        %v605 = vpop.f32.mrb[0].mxu0
        %v606 = vadd.f32 0.0, %v605
        %v607 = vpop.f32.mrb[0].mxu0
        %608 = vmatprep.mubr.f32.mxu0 0.0
        %609 = vmatmul.mubr.f32.gmra.mrb[0].mxu0 %v537
        %v610 = vpop.f32.mrb[0].mxu0
        %v611 = vadd.f32 0.0, %v610
        %v612 = vpop.f32.mrb[0].mxu0
        %613 = vdwg.mxu0
        %v614 = vsel %vm364, %v606, 0.0
        %v615 = vsel %vm364, %v611, 0.0
        %v616 = vadd.f32 %v614, %v615
        %v617 = vrot.slane %v616, 4
        %v618 = vadd.f32 %v616, %v617
        %v619 = vrot.slane %v618, 2
        %v620 = vadd.f32 %v618, %v619
        %v621 = vrot.slane %v620, 1
        %v622 = vadd.f32 %v620, %v621
        %v623 = vrcp.pop 16.0
        %v624 = vmul.f32 %v622, %v623
        %v625 = vsub.f32 %v606, %v624
        %v626 = vsub.f32 %v611, %v624
        %v627 = vmul.f32 %v625, %v625
        %v628 = vmul.f32 %v626, %v626
        %v629 = vsel %vm364, %v627, 0.0
        %v630 = vsel %vm364, %v628, 0.0
        %v631 = vadd.f32 %v629, %v630
        %v632 = vrot.slane %v631, 4
        %v633 = vadd.f32 %v631, %v632
        %v634 = vrot.slane %v633, 2
        %v635 = vadd.f32 %v633, %v634
        %v636 = vrot.slane %v635, 1
        %v637 = vadd.f32 %v635, %v636
        %v638 = vmul.f32 %v637, %v623
        %v639 = vld [vmem:[%s4] sm:$0x1]
        %v640 = vadd.f32 %v638, 1e-05
        %v641 = vrsqrt.pop %v640
        %v642 = vmul.f32 %v639, %v641
        %v643 = vld [vmem:[%s5] sm:$0x1]
        %v644 = vmul.f32 %v624, %v642
        %v645 = vsub.f32 %v643, %v644
        %v647 = vlaneseq
        %v648 = vshrl.u32 %v647, 7
        %v649 = vsub.s32 0, %v648
        %v650 = vrot.slane %v642, %v649
        %v652 = vmul.f32 %v606, %v650
        %v653 = vmul.f32 %v611, %v650
        %v655 = vlaneseq
        %v656 = vshrl.u32 %v655, 7
        %v657 = vsub.s32 0, %v656
        %v658 = vrot.slane %v645, %v657
        %v660 = vadd.f32 %v652, %v658
        %v661 = vadd.f32 %v653, %v658
        %v662 = vmax.f32 %v660, 0.0
        %v663 = vmax.f32 %v661, 0.0
        %s664 = scalar_lea.vmem %s2, 32
        %v665 = vld [vmem:[%s664] sm:$0xff]
        %v666 = vld [vmem:[%s664 + $0x8] sm:$0xff]
        %v667 = vld [vmem:[%s664 + $0x10] sm:$0xff]
        %v668 = vld [vmem:[%s664 + $0x18] sm:$0xff]
        %v670 = vsel %vm364, %v662, 0
        %v673 = vsel %vm364, %v663, 0
        %675 = vmatprep.subr.mxu0 0.0
        %676 = vmatpush1.msra.mxu0 %v665
        %677 = vmatprep.subr.mxu0 0.0
        %678 = vmatpush1.msra.mxu0 %v666
        %679 = vmatprep.subr.mxu0 0.0
        %680 = vmatpush1.msra.mxu0 %v667
        %681 = vmatprep.subr.mxu0 0.0
        %682 = vmatpush1.msra.mxu0 %v668
        %683 = vmatprep.subr.mxu0 0.0
        %684 = vmatpush1.msra.mxu0 0.0
        %685 = vmatprep.subr.mxu0 0.0
        %686 = vmatpush1.msra.mxu0 0.0
        %687 = vmatprep.subr.mxu0 0.0
        %688 = vmatpush1.msra.mxu0 0.0
        %689 = vmatprep.subr.mxu0 0.0
        %690 = vmatpush1.msra.mxu0 0.0
        %691 = vmatprep.subr.mxu0 0.0
        %692 = vmatpush1.msra.mxu0 0.0
        %693 = vmatprep.subr.mxu0 0.0
        %694 = vmatpush1.msra.mxu0 0.0
        %695 = vmatprep.subr.mxu0 0.0
        %696 = vmatpush1.msra.mxu0 0.0
        %697 = vmatprep.subr.mxu0 0.0
        %698 = vmatpush1.msra.mxu0 0.0
        %699 = vmatprep.subr.mxu0 0.0
        %700 = vmatpush1.msra.mxu0 0.0
        %701 = vmatprep.subr.mxu0 0.0
        %702 = vmatpush1.msra.mxu0 0.0
        %703 = vmatprep.subr.mxu0 0.0
        %704 = vmatpush1.msra.mxu0 0.0
        %705 = vmatprep.subr.mxu0 0.0
        %706 = vmatpush1.msra.mxu0 0.0
        %707 = vmatprep.subr.mxu0 0.0
        %708 = vmatpush1.msra.mxu0 0.0
        %709 = vmatprep.subr.mxu0 0.0
        %710 = vmatpush1.msra.mxu0 0.0
        %711 = vmatprep.subr.mxu0 0.0
        %712 = vmatpush1.msra.mxu0 0.0
        %713 = vmatprep.subr.mxu0 0.0
        %714 = vmatpush1.msra.mxu0 0.0
        %715 = vmatprep.subr.mxu0 0.0
        %716 = vmatpush1.msra.mxu0 0.0
        %717 = vmatprep.subr.mxu0 0.0
        %718 = vmatpush1.msra.mxu0 0.0
        %719 = vmatprep.subr.mxu0 0.0
        %720 = vmatpush1.msra.mxu0 0.0
        %721 = vmatprep.subr.mxu0 0.0
        %722 = vmatpush1.msra.mxu0 0.0
        %723 = vmatprep.subr.mxu0 0.0
        %724 = vmatpush1.msra.mxu0 0.0
        %725 = vmatprep.subr.mxu0 0.0
        %726 = vmatpush1.msra.mxu0 0.0
        %727 = vmatprep.subr.mxu0 0.0
        %728 = vmatpush1.msra.mxu0 0.0
        %729 = vmatprep.subr.mxu0 0.0
        %730 = vmatpush1.msra.mxu0 0.0
        %731 = vmatprep.subr.mxu0 0.0
        %732 = vmatpush1.msra.mxu0 0.0
        %733 = vmatprep.subr.mxu0 0.0
        %734 = vmatpush1.msra.mxu0 0.0
        %735 = vmatprep.subr.mxu0 0.0
        %736 = vmatpush1.msra.mxu0 0.0
        %737 = vmatprep.subr.mxu0 0.0
        %738 = vmatpush1.msra.mxu0 0.0
        %739 = vmatprep.mubr.f32.mxu0 0.0
        %740 = vmatmul.mubr.f32.gmra.mrb[0].mxu0 %v670
        %v741 = vpop.f32.mrb[0].mxu0
        %v742 = vadd.f32 0.0, %v741
        %v743 = vpop.f32.mrb[0].mxu0
        %744 = vmatprep.mubr.f32.mxu0 0.0
        %745 = vmatmul.mubr.f32.gmra.mrb[0].mxu0 %v673
        %v746 = vpop.f32.mrb[0].mxu0
        %v747 = vadd.f32 0.0, %v746
        %v748 = vpop.f32.mrb[0].mxu0
        %749 = vdwg.mxu0
        %s750 = scalar_lea.vmem [#allocation3], 32
        %v751 = vld [vmem:[%s750] sm:$0xff]
        %v752 = vld [vmem:[%s750 + $0x8] sm:$0xff]
        %v753 = vld [vmem:[%s750 + $0x10] sm:$0xff]
        %v754 = vld [vmem:[%s750 + $0x18] sm:$0xff]
        %755 = vmatprep.subr.mxu0 0.0
        %756 = vmatpush1.msra.mxu0 %v751
        %757 = vmatprep.subr.mxu0 0.0
        %758 = vmatpush1.msra.mxu0 %v752
        %759 = vmatprep.subr.mxu0 0.0
        %760 = vmatpush1.msra.mxu0 %v753
        %761 = vmatprep.subr.mxu0 0.0
        %762 = vmatpush1.msra.mxu0 %v754
        %763 = vmatprep.subr.mxu0 0.0
        %764 = vmatpush1.msra.mxu0 0.0
        %765 = vmatprep.subr.mxu0 0.0
        %766 = vmatpush1.msra.mxu0 0.0
        %767 = vmatprep.subr.mxu0 0.0
        %768 = vmatpush1.msra.mxu0 0.0
        %769 = vmatprep.subr.mxu0 0.0
        %770 = vmatpush1.msra.mxu0 0.0
        %771 = vmatprep.subr.mxu0 0.0
        %772 = vmatpush1.msra.mxu0 0.0
        %773 = vmatprep.subr.mxu0 0.0
        %774 = vmatpush1.msra.mxu0 0.0
        %775 = vmatprep.subr.mxu0 0.0
        %776 = vmatpush1.msra.mxu0 0.0
        %777 = vmatprep.subr.mxu0 0.0
        %778 = vmatpush1.msra.mxu0 0.0
        %779 = vmatprep.subr.mxu0 0.0
        %780 = vmatpush1.msra.mxu0 0.0
        %781 = vmatprep.subr.mxu0 0.0
        %782 = vmatpush1.msra.mxu0 0.0
        %783 = vmatprep.subr.mxu0 0.0
        %784 = vmatpush1.msra.mxu0 0.0
        %785 = vmatprep.subr.mxu0 0.0
        %786 = vmatpush1.msra.mxu0 0.0
        %787 = vmatprep.subr.mxu0 0.0
        %788 = vmatpush1.msra.mxu0 0.0
        %789 = vmatprep.subr.mxu0 0.0
        %790 = vmatpush1.msra.mxu0 0.0
        %791 = vmatprep.subr.mxu0 0.0
        %792 = vmatpush1.msra.mxu0 0.0
        %793 = vmatprep.subr.mxu0 0.0
        %794 = vmatpush1.msra.mxu0 0.0
        %795 = vmatprep.subr.mxu0 0.0
        %796 = vmatpush1.msra.mxu0 0.0
        %797 = vmatprep.subr.mxu0 0.0
        %798 = vmatpush1.msra.mxu0 0.0
        %799 = vmatprep.subr.mxu0 0.0
        %800 = vmatpush1.msra.mxu0 0.0
        %801 = vmatprep.subr.mxu0 0.0
        %802 = vmatpush1.msra.mxu0 0.0
        %803 = vmatprep.subr.mxu0 0.0
        %804 = vmatpush1.msra.mxu0 0.0
        %805 = vmatprep.subr.mxu0 0.0
        %806 = vmatpush1.msra.mxu0 0.0
        %807 = vmatprep.subr.mxu0 0.0
        %808 = vmatpush1.msra.mxu0 0.0
        %809 = vmatprep.subr.mxu0 0.0
        %810 = vmatpush1.msra.mxu0 0.0
        %811 = vmatprep.subr.mxu0 0.0
        %812 = vmatpush1.msra.mxu0 0.0
        %813 = vmatprep.subr.mxu0 0.0
        %814 = vmatpush1.msra.mxu0 0.0
        %815 = vmatprep.subr.mxu0 0.0
        %816 = vmatpush1.msra.mxu0 0.0
        %817 = vmatprep.subr.mxu0 0.0
        %818 = vmatpush1.msra.mxu0 0.0
        %819 = vmatprep.mubr.f32.mxu0 0.0
        %820 = vmatmul.mubr.f32.gmra.mrb[0].mxu0 %v670
        %v821 = vpop.f32.mrb[0].mxu0
        %v822 = vadd.f32 0.0, %v821
        %v823 = vpop.f32.mrb[0].mxu0
        %824 = vmatprep.mubr.f32.mxu0 0.0
        %825 = vmatmul.mubr.f32.gmra.mrb[0].mxu0 %v673
        %v826 = vpop.f32.mrb[0].mxu0
        %v827 = vadd.f32 0.0, %v826
        %v828 = vpop.f32.mrb[0].mxu0
        %829 = vdwg.mxu0
        %830 = vst.msk [vmem:[#allocation2] sm:$0xff] %vm364, %v742
        %831 = vst.msk [vmem:[#allocation2 + $0x8] sm:$0xff] %vm364, %v747
        %832 = vst.msk [vmem:[#allocation2 + $0x10] sm:$0xff] %vm364, %v822
        %833 = vst.msk [vmem:[#allocation2 + $0x18] sm:$0xff] %vm364, %v827
        %v834 = vld [vmem:[#allocation2] sm:$0xff]
        %v835 = vld [vmem:[#allocation2 + $0x8] sm:$0xff]
        %v836 = vld [vmem:[#allocation2 + $0x10] sm:$0xff]
        %v837 = vld [vmem:[#allocation2 + $0x18] sm:$0xff]
        %838 = vmatprep.subr.mxu0 0.0
        %839 = vmatpush1.msra.mxu0 %v834
        %840 = vmatprep.subr.mxu0 0.0
        %841 = vmatpush1.msra.mxu0 %v835
        %842 = vmatprep.subr.mxu0 0.0
        %843 = vmatpush1.msra.mxu0 %v836
        %844 = vmatprep.subr.mxu0 0.0
        %845 = vmatpush1.msra.mxu0 %v837
        %846 = vmatprep.subr.mxu0 0.0
        %847 = vmatpush1.msra.mxu0 0.0
        %848 = vmatprep.subr.mxu0 0.0
        %849 = vmatpush1.msra.mxu0 0.0
        %850 = vmatprep.subr.mxu0 0.0
        %851 = vmatpush1.msra.mxu0 0.0
        %852 = vmatprep.subr.mxu0 0.0
        %853 = vmatpush1.msra.mxu0 0.0
        %854 = vmatprep.subr.mxu0 0.0
        %855 = vmatpush1.msra.mxu0 0.0
        %856 = vmatprep.subr.mxu0 0.0
        %857 = vmatpush1.msra.mxu0 0.0
        %858 = vmatprep.subr.mxu0 0.0
        %859 = vmatpush1.msra.mxu0 0.0
        %860 = vmatprep.subr.mxu0 0.0
        %861 = vmatpush1.msra.mxu0 0.0
        %862 = vmatprep.subr.mxu0 0.0
        %863 = vmatpush1.msra.mxu0 0.0
        %864 = vmatprep.subr.mxu0 0.0
        %865 = vmatpush1.msra.mxu0 0.0
        %866 = vmatprep.subr.mxu0 0.0
        %867 = vmatpush1.msra.mxu0 0.0
        %868 = vmatprep.subr.mxu0 0.0
        %869 = vmatpush1.msra.mxu0 0.0
        %870 = vmatprep.subr.mxu0 0.0
        %871 = vmatpush1.msra.mxu0 0.0
        %872 = vmatprep.subr.mxu0 0.0
        %873 = vmatpush1.msra.mxu0 0.0
        %874 = vmatprep.subr.mxu0 0.0
        %875 = vmatpush1.msra.mxu0 0.0
        %876 = vmatprep.subr.mxu0 0.0
        %877 = vmatpush1.msra.mxu0 0.0
        %878 = vmatprep.subr.mxu0 0.0
        %879 = vmatpush1.msra.mxu0 0.0
        %880 = vmatprep.subr.mxu0 0.0
        %881 = vmatpush1.msra.mxu0 0.0
        %882 = vmatprep.subr.mxu0 0.0
        %883 = vmatpush1.msra.mxu0 0.0
        %884 = vmatprep.subr.mxu0 0.0
        %885 = vmatpush1.msra.mxu0 0.0
        %886 = vmatprep.subr.mxu0 0.0
        %887 = vmatpush1.msra.mxu0 0.0
        %888 = vmatprep.subr.mxu0 0.0
        %889 = vmatpush1.msra.mxu0 0.0
        %890 = vmatprep.subr.mxu0 0.0
        %891 = vmatpush1.msra.mxu0 0.0
        %892 = vmatprep.subr.mxu0 0.0
        %893 = vmatpush1.msra.mxu0 0.0
        %894 = vmatprep.subr.mxu0 0.0
        %895 = vmatpush1.msra.mxu0 0.0
        %896 = vmatprep.subr.mxu0 0.0
        %897 = vmatpush1.msra.mxu0 0.0
        %898 = vmatprep.subr.mxu0 0.0
        %899 = vmatpush1.msra.mxu0 0.0
        %900 = vmatprep.subr.mxu0 0.0
        %901 = vmatpush1.msra.mxu0 0.0
        %902 = vmatprep.mubr.f32.mxu0 0.0
        %903 = vmatmul.mubr.f32.gmra.mrb[0].mxu0 %v534
        %v904 = vpop.f32.mrb[0].mxu0
        %v905 = vadd.f32 0.0, %v904
        %v906 = vpop.f32.mrb[0].mxu0
        %907 = vmatprep.mubr.f32.mxu0 0.0
        %908 = vmatmul.mubr.f32.gmra.mrb[0].mxu0 %v537
        %v909 = vpop.f32.mrb[0].mxu0
        %v910 = vadd.f32 0.0, %v909
        %v911 = vpop.f32.mrb[0].mxu0
        %912 = vdwg.mxu0
        %v913 = vsel %vm364, %v905, 0.0
        %v914 = vsel %vm364, %v910, 0.0
        %v915 = vadd.f32 %v913, %v914
        %v916 = vrot.slane %v915, 4
        %v917 = vadd.f32 %v915, %v916
        %v918 = vrot.slane %v917, 2
        %v919 = vadd.f32 %v917, %v918
        %v920 = vrot.slane %v919, 1
        %v921 = vadd.f32 %v919, %v920
        %v922 = vmul.f32 %v921, %v623
        %v923 = vsub.f32 %v905, %v922
        %v924 = vsub.f32 %v910, %v922
        %v925 = vmul.f32 %v923, %v923
        %v926 = vmul.f32 %v924, %v924
        %v927 = vsel %vm364, %v925, 0.0
        %v928 = vsel %vm364, %v926, 0.0
        %v929 = vadd.f32 %v927, %v928
        %v930 = vrot.slane %v929, 4
        %v931 = vadd.f32 %v929, %v930
        %v932 = vrot.slane %v931, 2
        %v933 = vadd.f32 %v931, %v932
        %v934 = vrot.slane %v933, 1
        %v935 = vadd.f32 %v933, %v934
        %v936 = vmul.f32 %v935, %v623
        %s937 = scalar_lea.vmem %s4, 1
        %v938 = vld [vmem:[%s937] sm:$0x1]
        %v939 = vadd.f32 %v936, 1e-05
        %v940 = vrsqrt.pop %v939
        %v941 = vmul.f32 %v938, %v940
        %s942 = scalar_lea.vmem %s5, 1
        %v943 = vld [vmem:[%s942] sm:$0x1]
        %v944 = vmul.f32 %v922, %v941
        %v945 = vsub.f32 %v943, %v944
        %v947 = vlaneseq
        %v948 = vshrl.u32 %v947, 7
        %v949 = vsub.s32 0, %v948
        %v950 = vrot.slane %v941, %v949
        %v952 = vmul.f32 %v905, %v950
        %v953 = vmul.f32 %v910, %v950
        %v955 = vlaneseq
        %v956 = vshrl.u32 %v955, 7
        %v957 = vsub.s32 0, %v956
        %v958 = vrot.slane %v945, %v957
        %v960 = vadd.f32 %v952, %v958
        %v961 = vadd.f32 %v953, %v958
        %v962 = vmax.f32 %v960, 0.0
        %v963 = vmax.f32 %v961, 0.0
        %s964 = scalar_lea.vmem %s2, 64
        %v965 = vld [vmem:[%s964] sm:$0xff]
        %v966 = vld [vmem:[%s964 + $0x8] sm:$0xff]
        %v967 = vld [vmem:[%s964 + $0x10] sm:$0xff]
        %v968 = vld [vmem:[%s964 + $0x18] sm:$0xff]
        %v970 = vsel %vm364, %v962, 0
        %v973 = vsel %vm364, %v963, 0
        %975 = vmatprep.subr.mxu0 0.0
        %976 = vmatpush1.msra.mxu0 %v965
        %977 = vmatprep.subr.mxu0 0.0
        %978 = vmatpush1.msra.mxu0 %v966
        %979 = vmatprep.subr.mxu0 0.0
        %980 = vmatpush1.msra.mxu0 %v967
        %981 = vmatprep.subr.mxu0 0.0
        %982 = vmatpush1.msra.mxu0 %v968
        %983 = vmatprep.subr.mxu0 0.0
        %984 = vmatpush1.msra.mxu0 0.0
        %985 = vmatprep.subr.mxu0 0.0
        %986 = vmatpush1.msra.mxu0 0.0
        %987 = vmatprep.subr.mxu0 0.0
        %988 = vmatpush1.msra.mxu0 0.0
        %989 = vmatprep.subr.mxu0 0.0
        %990 = vmatpush1.msra.mxu0 0.0
        %991 = vmatprep.subr.mxu0 0.0
        %992 = vmatpush1.msra.mxu0 0.0
        %993 = vmatprep.subr.mxu0 0.0
        %994 = vmatpush1.msra.mxu0 0.0
        %995 = vmatprep.subr.mxu0 0.0
        %996 = vmatpush1.msra.mxu0 0.0
        %997 = vmatprep.subr.mxu0 0.0
        %998 = vmatpush1.msra.mxu0 0.0
        %999 = vmatprep.subr.mxu0 0.0
        %1000 = vmatpush1.msra.mxu0 0.0
        %1001 = vmatprep.subr.mxu0 0.0
        %1002 = vmatpush1.msra.mxu0 0.0
        %1003 = vmatprep.subr.mxu0 0.0
        %1004 = vmatpush1.msra.mxu0 0.0
        %1005 = vmatprep.subr.mxu0 0.0
        %1006 = vmatpush1.msra.mxu0 0.0
        %1007 = vmatprep.subr.mxu0 0.0
        %1008 = vmatpush1.msra.mxu0 0.0
        %1009 = vmatprep.subr.mxu0 0.0
        %1010 = vmatpush1.msra.mxu0 0.0
        %1011 = vmatprep.subr.mxu0 0.0
        %1012 = vmatpush1.msra.mxu0 0.0
        %1013 = vmatprep.subr.mxu0 0.0
        %1014 = vmatpush1.msra.mxu0 0.0
        %1015 = vmatprep.subr.mxu0 0.0
        %1016 = vmatpush1.msra.mxu0 0.0
        %1017 = vmatprep.subr.mxu0 0.0
        %1018 = vmatpush1.msra.mxu0 0.0
        %1019 = vmatprep.subr.mxu0 0.0
        %1020 = vmatpush1.msra.mxu0 0.0
        %1021 = vmatprep.subr.mxu0 0.0
        %1022 = vmatpush1.msra.mxu0 0.0
        %1023 = vmatprep.subr.mxu0 0.0
        %1024 = vmatpush1.msra.mxu0 0.0
        %1025 = vmatprep.subr.mxu0 0.0
        %1026 = vmatpush1.msra.mxu0 0.0
        %1027 = vmatprep.subr.mxu0 0.0
        %1028 = vmatpush1.msra.mxu0 0.0
        %1029 = vmatprep.subr.mxu0 0.0
        %1030 = vmatpush1.msra.mxu0 0.0
        %1031 = vmatprep.subr.mxu0 0.0
        %1032 = vmatpush1.msra.mxu0 0.0
        %1033 = vmatprep.subr.mxu0 0.0
        %1034 = vmatpush1.msra.mxu0 0.0
        %1035 = vmatprep.subr.mxu0 0.0
        %1036 = vmatpush1.msra.mxu0 0.0
        %1037 = vmatprep.subr.mxu0 0.0
        %1038 = vmatpush1.msra.mxu0 0.0
        %1039 = vmatprep.mubr.f32.mxu0 0.0
        %1040 = vmatmul.mubr.f32.gmra.mrb[0].mxu0 %v970
        %v1041 = vpop.f32.mrb[0].mxu0
        %v1042 = vadd.f32 0.0, %v1041
        %v1043 = vpop.f32.mrb[0].mxu0
        %1044 = vmatprep.mubr.f32.mxu0 0.0
        %1045 = vmatmul.mubr.f32.gmra.mrb[0].mxu0 %v973
        %v1046 = vpop.f32.mrb[0].mxu0
        %v1047 = vadd.f32 0.0, %v1046
        %v1048 = vpop.f32.mrb[0].mxu0
        %1049 = vdwg.mxu0
        %s1050 = scalar_lea.vmem [#allocation3], 64
        %v1051 = vld [vmem:[%s1050] sm:$0xff]
        %v1052 = vld [vmem:[%s1050 + $0x8] sm:$0xff]
        %v1053 = vld [vmem:[%s1050 + $0x10] sm:$0xff]
        %v1054 = vld [vmem:[%s1050 + $0x18] sm:$0xff]
        %1055 = vmatprep.subr.mxu0 0.0
        %1056 = vmatpush1.msra.mxu0 %v1051
        %1057 = vmatprep.subr.mxu0 0.0
        %1058 = vmatpush1.msra.mxu0 %v1052
        %1059 = vmatprep.subr.mxu0 0.0
        %1060 = vmatpush1.msra.mxu0 %v1053
        %1061 = vmatprep.subr.mxu0 0.0
        %1062 = vmatpush1.msra.mxu0 %v1054
        %1063 = vmatprep.subr.mxu0 0.0
        %1064 = vmatpush1.msra.mxu0 0.0
        %1065 = vmatprep.subr.mxu0 0.0
        %1066 = vmatpush1.msra.mxu0 0.0
        %1067 = vmatprep.subr.mxu0 0.0
        %1068 = vmatpush1.msra.mxu0 0.0
        %1069 = vmatprep.subr.mxu0 0.0
        %1070 = vmatpush1.msra.mxu0 0.0
        %1071 = vmatprep.subr.mxu0 0.0
        %1072 = vmatpush1.msra.mxu0 0.0
        %1073 = vmatprep.subr.mxu0 0.0
        %1074 = vmatpush1.msra.mxu0 0.0
        %1075 = vmatprep.subr.mxu0 0.0
        %1076 = vmatpush1.msra.mxu0 0.0
        %1077 = vmatprep.subr.mxu0 0.0
        %1078 = vmatpush1.msra.mxu0 0.0
        %1079 = vmatprep.subr.mxu0 0.0
        %1080 = vmatpush1.msra.mxu0 0.0
        %1081 = vmatprep.subr.mxu0 0.0
        %1082 = vmatpush1.msra.mxu0 0.0
        %1083 = vmatprep.subr.mxu0 0.0
        %1084 = vmatpush1.msra.mxu0 0.0
        %1085 = vmatprep.subr.mxu0 0.0
        %1086 = vmatpush1.msra.mxu0 0.0
        %1087 = vmatprep.subr.mxu0 0.0
        %1088 = vmatpush1.msra.mxu0 0.0
        %1089 = vmatprep.subr.mxu0 0.0
        %1090 = vmatpush1.msra.mxu0 0.0
        %1091 = vmatprep.subr.mxu0 0.0
        %1092 = vmatpush1.msra.mxu0 0.0
        %1093 = vmatprep.subr.mxu0 0.0
        %1094 = vmatpush1.msra.mxu0 0.0
        %1095 = vmatprep.subr.mxu0 0.0
        %1096 = vmatpush1.msra.mxu0 0.0
        %1097 = vmatprep.subr.mxu0 0.0
        %1098 = vmatpush1.msra.mxu0 0.0
        %1099 = vmatprep.subr.mxu0 0.0
        %1100 = vmatpush1.msra.mxu0 0.0
        %1101 = vmatprep.subr.mxu0 0.0
        %1102 = vmatpush1.msra.mxu0 0.0
        %1103 = vmatprep.subr.mxu0 0.0
        %1104 = vmatpush1.msra.mxu0 0.0
        %1105 = vmatprep.subr.mxu0 0.0
        %1106 = vmatpush1.msra.mxu0 0.0
        %1107 = vmatprep.subr.mxu0 0.0
        %1108 = vmatpush1.msra.mxu0 0.0
        %1109 = vmatprep.subr.mxu0 0.0
        %1110 = vmatpush1.msra.mxu0 0.0
        %1111 = vmatprep.subr.mxu0 0.0
        %1112 = vmatpush1.msra.mxu0 0.0
        %1113 = vmatprep.subr.mxu0 0.0
        %1114 = vmatpush1.msra.mxu0 0.0
        %1115 = vmatprep.subr.mxu0 0.0
        %1116 = vmatpush1.msra.mxu0 0.0
        %1117 = vmatprep.subr.mxu0 0.0
        %1118 = vmatpush1.msra.mxu0 0.0
        %1119 = vmatprep.mubr.f32.mxu0 0.0
        %1120 = vmatmul.mubr.f32.gmra.mrb[0].mxu0 %v970
        %v1121 = vpop.f32.mrb[0].mxu0
        %v1122 = vadd.f32 0.0, %v1121
        %v1123 = vpop.f32.mrb[0].mxu0
        %1124 = vmatprep.mubr.f32.mxu0 0.0
        %1125 = vmatmul.mubr.f32.gmra.mrb[0].mxu0 %v973
        %v1126 = vpop.f32.mrb[0].mxu0
        %v1127 = vadd.f32 0.0, %v1126
        %v1128 = vpop.f32.mrb[0].mxu0
        %1129 = vdwg.mxu0
        %1130 = vst.msk [vmem:[#allocation2] sm:$0xff] %vm364, %v1042
        %1131 = vst.msk [vmem:[#allocation2 + $0x8] sm:$0xff] %vm364, %v1047
        %1132 = vst.msk [vmem:[#allocation2 + $0x10] sm:$0xff] %vm364, %v1122
        %1133 = vst.msk [vmem:[#allocation2 + $0x18] sm:$0xff] %vm364, %v1127
        %v1134 = vld [vmem:[#allocation2] sm:$0xff]
        %v1135 = vld [vmem:[#allocation2 + $0x8] sm:$0xff]
        %v1136 = vld [vmem:[#allocation2 + $0x10] sm:$0xff]
        %v1137 = vld [vmem:[#allocation2 + $0x18] sm:$0xff]
        %1138 = vmatprep.subr.mxu0 0.0
        %1139 = vmatpush1.msra.mxu0 %v1134
        %1140 = vmatprep.subr.mxu0 0.0
        %1141 = vmatpush1.msra.mxu0 %v1135
        %1142 = vmatprep.subr.mxu0 0.0
        %1143 = vmatpush1.msra.mxu0 %v1136
        %1144 = vmatprep.subr.mxu0 0.0
        %1145 = vmatpush1.msra.mxu0 %v1137
        %1146 = vmatprep.subr.mxu0 0.0
        %1147 = vmatpush1.msra.mxu0 0.0
        %1148 = vmatprep.subr.mxu0 0.0
        %1149 = vmatpush1.msra.mxu0 0.0
        %1150 = vmatprep.subr.mxu0 0.0
        %1151 = vmatpush1.msra.mxu0 0.0
        %1152 = vmatprep.subr.mxu0 0.0
        %1153 = vmatpush1.msra.mxu0 0.0
        %1154 = vmatprep.subr.mxu0 0.0
        %1155 = vmatpush1.msra.mxu0 0.0
        %1156 = vmatprep.subr.mxu0 0.0
        %1157 = vmatpush1.msra.mxu0 0.0
        %1158 = vmatprep.subr.mxu0 0.0
        %1159 = vmatpush1.msra.mxu0 0.0
        %1160 = vmatprep.subr.mxu0 0.0
        %1161 = vmatpush1.msra.mxu0 0.0
        %1162 = vmatprep.subr.mxu0 0.0
        %1163 = vmatpush1.msra.mxu0 0.0
        %1164 = vmatprep.subr.mxu0 0.0
        %1165 = vmatpush1.msra.mxu0 0.0
        %1166 = vmatprep.subr.mxu0 0.0
        %1167 = vmatpush1.msra.mxu0 0.0
        %1168 = vmatprep.subr.mxu0 0.0
        %1169 = vmatpush1.msra.mxu0 0.0
        %1170 = vmatprep.subr.mxu0 0.0
        %1171 = vmatpush1.msra.mxu0 0.0
        %1172 = vmatprep.subr.mxu0 0.0
        %1173 = vmatpush1.msra.mxu0 0.0
        %1174 = vmatprep.subr.mxu0 0.0
        %1175 = vmatpush1.msra.mxu0 0.0
        %1176 = vmatprep.subr.mxu0 0.0
        %1177 = vmatpush1.msra.mxu0 0.0
        %1178 = vmatprep.subr.mxu0 0.0
        %1179 = vmatpush1.msra.mxu0 0.0
        %1180 = vmatprep.subr.mxu0 0.0
        %1181 = vmatpush1.msra.mxu0 0.0
        %1182 = vmatprep.subr.mxu0 0.0
        %1183 = vmatpush1.msra.mxu0 0.0
        %1184 = vmatprep.subr.mxu0 0.0
        %1185 = vmatpush1.msra.mxu0 0.0
        %1186 = vmatprep.subr.mxu0 0.0
        %1187 = vmatpush1.msra.mxu0 0.0
        %1188 = vmatprep.subr.mxu0 0.0
        %1189 = vmatpush1.msra.mxu0 0.0
        %1190 = vmatprep.subr.mxu0 0.0
        %1191 = vmatpush1.msra.mxu0 0.0
        %1192 = vmatprep.subr.mxu0 0.0
        %1193 = vmatpush1.msra.mxu0 0.0
        %1194 = vmatprep.subr.mxu0 0.0
        %1195 = vmatpush1.msra.mxu0 0.0
        %1196 = vmatprep.subr.mxu0 0.0
        %1197 = vmatpush1.msra.mxu0 0.0
        %1198 = vmatprep.subr.mxu0 0.0
        %1199 = vmatpush1.msra.mxu0 0.0
        %1200 = vmatprep.subr.mxu0 0.0
        %1201 = vmatpush1.msra.mxu0 0.0
        %1202 = vmatprep.mubr.f32.mxu0 0.0
        %1203 = vmatmul.mubr.f32.gmra.mrb[0].mxu0 %v534
        %v1204 = vpop.f32.mrb[0].mxu0
        %v1205 = vadd.f32 0.0, %v1204
        %v1206 = vpop.f32.mrb[0].mxu0
        %1207 = vmatprep.mubr.f32.mxu0 0.0
        %1208 = vmatmul.mubr.f32.gmra.mrb[0].mxu0 %v537
        %v1209 = vpop.f32.mrb[0].mxu0
        %v1210 = vadd.f32 0.0, %v1209
        %v1211 = vpop.f32.mrb[0].mxu0
        %1212 = vdwg.mxu0
        %v1213 = vsel %vm364, %v1205, 0.0
        %v1214 = vsel %vm364, %v1210, 0.0
        %v1215 = vadd.f32 %v1213, %v1214
        %v1216 = vrot.slane %v1215, 4
        %v1217 = vadd.f32 %v1215, %v1216
        %v1218 = vrot.slane %v1217, 2
        %v1219 = vadd.f32 %v1217, %v1218
        %v1220 = vrot.slane %v1219, 1
        %v1221 = vadd.f32 %v1219, %v1220
        %v1222 = vmul.f32 %v1221, %v623
        %v1223 = vsub.f32 %v1205, %v1222
        %v1224 = vsub.f32 %v1210, %v1222
        %v1225 = vmul.f32 %v1223, %v1223
        %v1226 = vmul.f32 %v1224, %v1224
        %v1227 = vsel %vm364, %v1225, 0.0
        %v1228 = vsel %vm364, %v1226, 0.0
        %v1229 = vadd.f32 %v1227, %v1228
        %v1230 = vrot.slane %v1229, 4
        %v1231 = vadd.f32 %v1229, %v1230
        %v1232 = vrot.slane %v1231, 2
        %v1233 = vadd.f32 %v1231, %v1232
        %v1234 = vrot.slane %v1233, 1
        %v1235 = vadd.f32 %v1233, %v1234
        %v1236 = vmul.f32 %v1235, %v623
        %s1237 = scalar_lea.vmem %s4, 2
        %v1238 = vld [vmem:[%s1237] sm:$0x1]
        %v1239 = vadd.f32 %v1236, 1e-05
        %v1240 = vrsqrt.pop %v1239
        %v1241 = vmul.f32 %v1238, %v1240
        %s1242 = scalar_lea.vmem %s5, 2
        %v1243 = vld [vmem:[%s1242] sm:$0x1]
        %v1244 = vmul.f32 %v1222, %v1241
        %v1245 = vsub.f32 %v1243, %v1244
        %v1247 = vlaneseq
        %v1248 = vshrl.u32 %v1247, 7
        %v1249 = vsub.s32 0, %v1248
        %v1250 = vrot.slane %v1241, %v1249
        %v1252 = vmul.f32 %v1205, %v1250
        %v1253 = vmul.f32 %v1210, %v1250
        %v1255 = vlaneseq
        %v1256 = vshrl.u32 %v1255, 7
        %v1257 = vsub.s32 0, %v1256
        %v1258 = vrot.slane %v1245, %v1257
        %v1260 = vadd.f32 %v1252, %v1258
        %v1261 = vadd.f32 %v1253, %v1258
        %v1262 = vadd.f32 %v1260, %v662
        %v1263 = vadd.f32 %v1261, %v663
        %v1264 = vmax.f32 %v1262, 0.0
        %v1265 = vmax.f32 %v1263, 0.0
        %s1266 = scalar_lea.vmem %s2, 96
        %v1267 = vld [vmem:[%s1266] sm:$0xff]
        %v1268 = vld [vmem:[%s1266 + $0x8] sm:$0xff]
        %v1269 = vld [vmem:[%s1266 + $0x10] sm:$0xff]
        %v1270 = vld [vmem:[%s1266 + $0x18] sm:$0xff]
        %v1272 = vsel %vm364, %v1264, 0
        %v1275 = vsel %vm364, %v1265, 0
        %1277 = vmatprep.subr.mxu0 0.0
        %1278 = vmatpush1.msra.mxu0 %v1267
        %1279 = vmatprep.subr.mxu0 0.0
        %1280 = vmatpush1.msra.mxu0 %v1268
        %1281 = vmatprep.subr.mxu0 0.0
        %1282 = vmatpush1.msra.mxu0 %v1269
        %1283 = vmatprep.subr.mxu0 0.0
        %1284 = vmatpush1.msra.mxu0 %v1270
        %1285 = vmatprep.subr.mxu0 0.0
        %1286 = vmatpush1.msra.mxu0 0.0
        %1287 = vmatprep.subr.mxu0 0.0
        %1288 = vmatpush1.msra.mxu0 0.0
        %1289 = vmatprep.subr.mxu0 0.0
        %1290 = vmatpush1.msra.mxu0 0.0
        %1291 = vmatprep.subr.mxu0 0.0
        %1292 = vmatpush1.msra.mxu0 0.0
        %1293 = vmatprep.subr.mxu0 0.0
        %1294 = vmatpush1.msra.mxu0 0.0
        %1295 = vmatprep.subr.mxu0 0.0
        %1296 = vmatpush1.msra.mxu0 0.0
        %1297 = vmatprep.subr.mxu0 0.0
        %1298 = vmatpush1.msra.mxu0 0.0
        %1299 = vmatprep.subr.mxu0 0.0
        %1300 = vmatpush1.msra.mxu0 0.0
        %1301 = vmatprep.subr.mxu0 0.0
        %1302 = vmatpush1.msra.mxu0 0.0
        %1303 = vmatprep.subr.mxu0 0.0
        %1304 = vmatpush1.msra.mxu0 0.0
        %1305 = vmatprep.subr.mxu0 0.0
        %1306 = vmatpush1.msra.mxu0 0.0
        %1307 = vmatprep.subr.mxu0 0.0
        %1308 = vmatpush1.msra.mxu0 0.0
        %1309 = vmatprep.subr.mxu0 0.0
        %1310 = vmatpush1.msra.mxu0 0.0
        %1311 = vmatprep.subr.mxu0 0.0
        %1312 = vmatpush1.msra.mxu0 0.0
        %1313 = vmatprep.subr.mxu0 0.0
        %1314 = vmatpush1.msra.mxu0 0.0
        %1315 = vmatprep.subr.mxu0 0.0
        %1316 = vmatpush1.msra.mxu0 0.0
        %1317 = vmatprep.subr.mxu0 0.0
        %1318 = vmatpush1.msra.mxu0 0.0
        %1319 = vmatprep.subr.mxu0 0.0
        %1320 = vmatpush1.msra.mxu0 0.0
        %1321 = vmatprep.subr.mxu0 0.0
        %1322 = vmatpush1.msra.mxu0 0.0
        %1323 = vmatprep.subr.mxu0 0.0
        %1324 = vmatpush1.msra.mxu0 0.0
        %1325 = vmatprep.subr.mxu0 0.0
        %1326 = vmatpush1.msra.mxu0 0.0
        %1327 = vmatprep.subr.mxu0 0.0
        %1328 = vmatpush1.msra.mxu0 0.0
        %1329 = vmatprep.subr.mxu0 0.0
        %1330 = vmatpush1.msra.mxu0 0.0
        %1331 = vmatprep.subr.mxu0 0.0
        %1332 = vmatpush1.msra.mxu0 0.0
        %1333 = vmatprep.subr.mxu0 0.0
        %1334 = vmatpush1.msra.mxu0 0.0
        %1335 = vmatprep.subr.mxu0 0.0
        %1336 = vmatpush1.msra.mxu0 0.0
        %1337 = vmatprep.subr.mxu0 0.0
        %1338 = vmatpush1.msra.mxu0 0.0
        %1339 = vmatprep.subr.mxu0 0.0
        %1340 = vmatpush1.msra.mxu0 0.0
        %1341 = vmatprep.mubr.f32.mxu0 0.0
        %1342 = vmatmul.mubr.f32.gmra.mrb[0].mxu0 %v1272
        %v1343 = vpop.f32.mrb[0].mxu0
        %v1344 = vadd.f32 0.0, %v1343
        %v1345 = vpop.f32.mrb[0].mxu0
        %1346 = vmatprep.mubr.f32.mxu0 0.0
        %1347 = vmatmul.mubr.f32.gmra.mrb[0].mxu0 %v1275
        %v1348 = vpop.f32.mrb[0].mxu0
        %v1349 = vadd.f32 0.0, %v1348
        %v1350 = vpop.f32.mrb[0].mxu0
        %1351 = vdwg.mxu0
        %s1352 = scalar_lea.vmem [#allocation3], 96
        %v1353 = vld [vmem:[%s1352] sm:$0xff]
        %v1354 = vld [vmem:[%s1352 + $0x8] sm:$0xff]
        %v1355 = vld [vmem:[%s1352 + $0x10] sm:$0xff]
        %v1356 = vld [vmem:[%s1352 + $0x18] sm:$0xff]
        %1357 = vmatprep.subr.mxu0 0.0
        %1358 = vmatpush1.msra.mxu0 %v1353
        %1359 = vmatprep.subr.mxu0 0.0
        %1360 = vmatpush1.msra.mxu0 %v1354
        %1361 = vmatprep.subr.mxu0 0.0
        %1362 = vmatpush1.msra.mxu0 %v1355
        %1363 = vmatprep.subr.mxu0 0.0
        %1364 = vmatpush1.msra.mxu0 %v1356
        %1365 = vmatprep.subr.mxu0 0.0
        %1366 = vmatpush1.msra.mxu0 0.0
        %1367 = vmatprep.subr.mxu0 0.0
        %1368 = vmatpush1.msra.mxu0 0.0
        %1369 = vmatprep.subr.mxu0 0.0
        %1370 = vmatpush1.msra.mxu0 0.0
        %1371 = vmatprep.subr.mxu0 0.0
        %1372 = vmatpush1.msra.mxu0 0.0
        %1373 = vmatprep.subr.mxu0 0.0
        %1374 = vmatpush1.msra.mxu0 0.0
        %1375 = vmatprep.subr.mxu0 0.0
        %1376 = vmatpush1.msra.mxu0 0.0
        %1377 = vmatprep.subr.mxu0 0.0
        %1378 = vmatpush1.msra.mxu0 0.0
        %1379 = vmatprep.subr.mxu0 0.0
        %1380 = vmatpush1.msra.mxu0 0.0
        %1381 = vmatprep.subr.mxu0 0.0
        %1382 = vmatpush1.msra.mxu0 0.0
        %1383 = vmatprep.subr.mxu0 0.0
        %1384 = vmatpush1.msra.mxu0 0.0
        %1385 = vmatprep.subr.mxu0 0.0
        %1386 = vmatpush1.msra.mxu0 0.0
        %1387 = vmatprep.subr.mxu0 0.0
        %1388 = vmatpush1.msra.mxu0 0.0
        %1389 = vmatprep.subr.mxu0 0.0
        %1390 = vmatpush1.msra.mxu0 0.0
        %1391 = vmatprep.subr.mxu0 0.0
        %1392 = vmatpush1.msra.mxu0 0.0
        %1393 = vmatprep.subr.mxu0 0.0
        %1394 = vmatpush1.msra.mxu0 0.0
        %1395 = vmatprep.subr.mxu0 0.0
        %1396 = vmatpush1.msra.mxu0 0.0
        %1397 = vmatprep.subr.mxu0 0.0
        %1398 = vmatpush1.msra.mxu0 0.0
        %1399 = vmatprep.subr.mxu0 0.0
        %1400 = vmatpush1.msra.mxu0 0.0
        %1401 = vmatprep.subr.mxu0 0.0
        %1402 = vmatpush1.msra.mxu0 0.0
        %1403 = vmatprep.subr.mxu0 0.0
        %1404 = vmatpush1.msra.mxu0 0.0
        %1405 = vmatprep.subr.mxu0 0.0
        %1406 = vmatpush1.msra.mxu0 0.0
        %1407 = vmatprep.subr.mxu0 0.0
        %1408 = vmatpush1.msra.mxu0 0.0
        %1409 = vmatprep.subr.mxu0 0.0
        %1410 = vmatpush1.msra.mxu0 0.0
        %1411 = vmatprep.subr.mxu0 0.0
        %1412 = vmatpush1.msra.mxu0 0.0
        %1413 = vmatprep.subr.mxu0 0.0
        %1414 = vmatpush1.msra.mxu0 0.0
        %1415 = vmatprep.subr.mxu0 0.0
        %1416 = vmatpush1.msra.mxu0 0.0
        %1417 = vmatprep.subr.mxu0 0.0
        %1418 = vmatpush1.msra.mxu0 0.0
        %1419 = vmatprep.subr.mxu0 0.0
        %1420 = vmatpush1.msra.mxu0 0.0
        %1421 = vmatprep.mubr.f32.mxu0 0.0
        %1422 = vmatmul.mubr.f32.gmra.mrb[0].mxu0 %v1272
        %v1423 = vpop.f32.mrb[0].mxu0
        %v1424 = vadd.f32 0.0, %v1423
        %v1425 = vpop.f32.mrb[0].mxu0
        %1426 = vmatprep.mubr.f32.mxu0 0.0
        %1427 = vmatmul.mubr.f32.gmra.mrb[0].mxu0 %v1275
        %v1428 = vpop.f32.mrb[0].mxu0
        %v1429 = vadd.f32 0.0, %v1428
        %v1430 = vpop.f32.mrb[0].mxu0
        %1431 = vdwg.mxu0
        %1432 = vst.msk [vmem:[#allocation2] sm:$0xff] %vm364, %v1344
        %1433 = vst.msk [vmem:[#allocation2 + $0x8] sm:$0xff] %vm364, %v1349
        %1434 = vst.msk [vmem:[#allocation2 + $0x10] sm:$0xff] %vm364, %v1424
        %1435 = vst.msk [vmem:[#allocation2 + $0x18] sm:$0xff] %vm364, %v1429
        %v1436 = vld [vmem:[#allocation2] sm:$0xff]
        %v1437 = vld [vmem:[#allocation2 + $0x8] sm:$0xff]
        %v1438 = vld [vmem:[#allocation2 + $0x10] sm:$0xff]
        %v1439 = vld [vmem:[#allocation2 + $0x18] sm:$0xff]
        %1440 = vmatprep.subr.mxu0 0.0
        %1441 = vmatpush1.msra.mxu0 %v1436
        %1442 = vmatprep.subr.mxu0 0.0
        %1443 = vmatpush1.msra.mxu0 %v1437
        %1444 = vmatprep.subr.mxu0 0.0
        %1445 = vmatpush1.msra.mxu0 %v1438
        %1446 = vmatprep.subr.mxu0 0.0
        %1447 = vmatpush1.msra.mxu0 %v1439
        %1448 = vmatprep.subr.mxu0 0.0
        %1449 = vmatpush1.msra.mxu0 0.0
        %1450 = vmatprep.subr.mxu0 0.0
        %1451 = vmatpush1.msra.mxu0 0.0
        %1452 = vmatprep.subr.mxu0 0.0
        %1453 = vmatpush1.msra.mxu0 0.0
        %1454 = vmatprep.subr.mxu0 0.0
        %1455 = vmatpush1.msra.mxu0 0.0
        %1456 = vmatprep.subr.mxu0 0.0
        %1457 = vmatpush1.msra.mxu0 0.0
        %1458 = vmatprep.subr.mxu0 0.0
        %1459 = vmatpush1.msra.mxu0 0.0
        %1460 = vmatprep.subr.mxu0 0.0
        %1461 = vmatpush1.msra.mxu0 0.0
        %1462 = vmatprep.subr.mxu0 0.0
        %1463 = vmatpush1.msra.mxu0 0.0
        %1464 = vmatprep.subr.mxu0 0.0
        %1465 = vmatpush1.msra.mxu0 0.0
        %1466 = vmatprep.subr.mxu0 0.0
        %1467 = vmatpush1.msra.mxu0 0.0
        %1468 = vmatprep.subr.mxu0 0.0
        %1469 = vmatpush1.msra.mxu0 0.0
        %1470 = vmatprep.subr.mxu0 0.0
        %1471 = vmatpush1.msra.mxu0 0.0
        %1472 = vmatprep.subr.mxu0 0.0
        %1473 = vmatpush1.msra.mxu0 0.0
        %1474 = vmatprep.subr.mxu0 0.0
        %1475 = vmatpush1.msra.mxu0 0.0
        %1476 = vmatprep.subr.mxu0 0.0
        %1477 = vmatpush1.msra.mxu0 0.0
        %1478 = vmatprep.subr.mxu0 0.0
        %1479 = vmatpush1.msra.mxu0 0.0
        %1480 = vmatprep.subr.mxu0 0.0
        %1481 = vmatpush1.msra.mxu0 0.0
        %1482 = vmatprep.subr.mxu0 0.0
        %1483 = vmatpush1.msra.mxu0 0.0
        %1484 = vmatprep.subr.mxu0 0.0
        %1485 = vmatpush1.msra.mxu0 0.0
        %1486 = vmatprep.subr.mxu0 0.0
        %1487 = vmatpush1.msra.mxu0 0.0
        %1488 = vmatprep.subr.mxu0 0.0
        %1489 = vmatpush1.msra.mxu0 0.0
        %1490 = vmatprep.subr.mxu0 0.0
        %1491 = vmatpush1.msra.mxu0 0.0
        %1492 = vmatprep.subr.mxu0 0.0
        %1493 = vmatpush1.msra.mxu0 0.0
        %1494 = vmatprep.subr.mxu0 0.0
        %1495 = vmatpush1.msra.mxu0 0.0
        %1496 = vmatprep.subr.mxu0 0.0
        %1497 = vmatpush1.msra.mxu0 0.0
        %1498 = vmatprep.subr.mxu0 0.0
        %1499 = vmatpush1.msra.mxu0 0.0
        %1500 = vmatprep.subr.mxu0 0.0
        %1501 = vmatpush1.msra.mxu0 0.0
        %1502 = vmatprep.subr.mxu0 0.0
        %1503 = vmatpush1.msra.mxu0 0.0
        %1504 = vmatprep.mubr.f32.mxu0 0.0
        %1505 = vmatmul.mubr.f32.gmra.mrb[0].mxu0 %v534
        %v1506 = vpop.f32.mrb[0].mxu0
        %v1507 = vadd.f32 0.0, %v1506
        %v1508 = vpop.f32.mrb[0].mxu0
        %1509 = vmatprep.mubr.f32.mxu0 0.0
        %1510 = vmatmul.mubr.f32.gmra.mrb[0].mxu0 %v537
        %v1511 = vpop.f32.mrb[0].mxu0
        %v1512 = vadd.f32 0.0, %v1511
        %v1513 = vpop.f32.mrb[0].mxu0
        %1514 = vdwg.mxu0
        %v1515 = vsel %vm364, %v1507, 0.0
        %v1516 = vsel %vm364, %v1512, 0.0
        %v1517 = vadd.f32 %v1515, %v1516
        %v1518 = vrot.slane %v1517, 4
        %v1519 = vadd.f32 %v1517, %v1518
        %v1520 = vrot.slane %v1519, 2
        %v1521 = vadd.f32 %v1519, %v1520
        %v1522 = vrot.slane %v1521, 1
        %v1523 = vadd.f32 %v1521, %v1522
        %v1524 = vmul.f32 %v1523, %v623
        %v1525 = vsub.f32 %v1507, %v1524
        %v1526 = vsub.f32 %v1512, %v1524
        %v1527 = vmul.f32 %v1525, %v1525
        %v1528 = vmul.f32 %v1526, %v1526
        %v1529 = vsel %vm364, %v1527, 0.0
        %v1530 = vsel %vm364, %v1528, 0.0
        %v1531 = vadd.f32 %v1529, %v1530
        %v1532 = vrot.slane %v1531, 4
        %v1533 = vadd.f32 %v1531, %v1532
        %v1534 = vrot.slane %v1533, 2
        %v1535 = vadd.f32 %v1533, %v1534
        %v1536 = vrot.slane %v1535, 1
        %v1537 = vadd.f32 %v1535, %v1536
        %v1538 = vmul.f32 %v1537, %v623
        %s1539 = scalar_lea.vmem %s4, 3
        %v1540 = vld [vmem:[%s1539] sm:$0x1]
        %v1541 = vadd.f32 %v1538, 1e-05
        %v1542 = vrsqrt.pop %v1541
        %v1543 = vmul.f32 %v1540, %v1542
        %s1544 = scalar_lea.vmem %s5, 3
        %v1545 = vld [vmem:[%s1544] sm:$0x1]
        %v1546 = vmul.f32 %v1524, %v1543
        %v1547 = vsub.f32 %v1545, %v1546
        %v1549 = vlaneseq
        %v1550 = vshrl.u32 %v1549, 7
        %v1551 = vsub.s32 0, %v1550
        %v1552 = vrot.slane %v1543, %v1551
        %v1554 = vmul.f32 %v1507, %v1552
        %v1555 = vmul.f32 %v1512, %v1552
        %v1557 = vlaneseq
        %v1558 = vshrl.u32 %v1557, 7
        %v1559 = vsub.s32 0, %v1558
        %v1560 = vrot.slane %v1547, %v1559
        %v1562 = vadd.f32 %v1554, %v1560
        %v1563 = vadd.f32 %v1555, %v1560
        %v1564 = vadd.f32 %v1562, %v962
        %v1565 = vadd.f32 %v1563, %v963
        %v1566 = vmax.f32 %v1564, 0.0
        %v1567 = vmax.f32 %v1565, 0.0
        %s1568 = scalar_lea.vmem %s2, 128
        %v1569 = vld [vmem:[%s1568] sm:$0xff]
        %v1570 = vld [vmem:[%s1568 + $0x8] sm:$0xff]
        %v1571 = vld [vmem:[%s1568 + $0x10] sm:$0xff]
        %v1572 = vld [vmem:[%s1568 + $0x18] sm:$0xff]
        %v1574 = vsel %vm364, %v1566, 0
        %v1577 = vsel %vm364, %v1567, 0
        %1579 = vmatprep.subr.mxu0 0.0
        %1580 = vmatpush1.msra.mxu0 %v1569
        %1581 = vmatprep.subr.mxu0 0.0
        %1582 = vmatpush1.msra.mxu0 %v1570
        %1583 = vmatprep.subr.mxu0 0.0
        %1584 = vmatpush1.msra.mxu0 %v1571
        %1585 = vmatprep.subr.mxu0 0.0
        %1586 = vmatpush1.msra.mxu0 %v1572
        %1587 = vmatprep.subr.mxu0 0.0
        %1588 = vmatpush1.msra.mxu0 0.0
        %1589 = vmatprep.subr.mxu0 0.0
        %1590 = vmatpush1.msra.mxu0 0.0
        %1591 = vmatprep.subr.mxu0 0.0
        %1592 = vmatpush1.msra.mxu0 0.0
        %1593 = vmatprep.subr.mxu0 0.0
        %1594 = vmatpush1.msra.mxu0 0.0
        %1595 = vmatprep.subr.mxu0 0.0
        %1596 = vmatpush1.msra.mxu0 0.0
        %1597 = vmatprep.subr.mxu0 0.0
        %1598 = vmatpush1.msra.mxu0 0.0
        %1599 = vmatprep.subr.mxu0 0.0
        %1600 = vmatpush1.msra.mxu0 0.0
        %1601 = vmatprep.subr.mxu0 0.0
        %1602 = vmatpush1.msra.mxu0 0.0
        %1603 = vmatprep.subr.mxu0 0.0
        %1604 = vmatpush1.msra.mxu0 0.0
        %1605 = vmatprep.subr.mxu0 0.0
        %1606 = vmatpush1.msra.mxu0 0.0
        %1607 = vmatprep.subr.mxu0 0.0
        %1608 = vmatpush1.msra.mxu0 0.0
        %1609 = vmatprep.subr.mxu0 0.0
        %1610 = vmatpush1.msra.mxu0 0.0
        %1611 = vmatprep.subr.mxu0 0.0
        %1612 = vmatpush1.msra.mxu0 0.0
        %1613 = vmatprep.subr.mxu0 0.0
        %1614 = vmatpush1.msra.mxu0 0.0
        %1615 = vmatprep.subr.mxu0 0.0
        %1616 = vmatpush1.msra.mxu0 0.0
        %1617 = vmatprep.subr.mxu0 0.0
        %1618 = vmatpush1.msra.mxu0 0.0
        %1619 = vmatprep.subr.mxu0 0.0
        %1620 = vmatpush1.msra.mxu0 0.0
        %1621 = vmatprep.subr.mxu0 0.0
        %1622 = vmatpush1.msra.mxu0 0.0
        %1623 = vmatprep.subr.mxu0 0.0
        %1624 = vmatpush1.msra.mxu0 0.0
        %1625 = vmatprep.subr.mxu0 0.0
        %1626 = vmatpush1.msra.mxu0 0.0
        %1627 = vmatprep.subr.mxu0 0.0
        %1628 = vmatpush1.msra.mxu0 0.0
        %1629 = vmatprep.subr.mxu0 0.0
        %1630 = vmatpush1.msra.mxu0 0.0
        %1631 = vmatprep.subr.mxu0 0.0
        %1632 = vmatpush1.msra.mxu0 0.0
        %1633 = vmatprep.subr.mxu0 0.0
        %1634 = vmatpush1.msra.mxu0 0.0
        %1635 = vmatprep.subr.mxu0 0.0
        %1636 = vmatpush1.msra.mxu0 0.0
        %1637 = vmatprep.subr.mxu0 0.0
        %1638 = vmatpush1.msra.mxu0 0.0
        %1639 = vmatprep.subr.mxu0 0.0
        %1640 = vmatpush1.msra.mxu0 0.0
        %1641 = vmatprep.subr.mxu0 0.0
        %1642 = vmatpush1.msra.mxu0 0.0
        %1643 = vmatprep.mubr.f32.mxu0 0.0
        %1644 = vmatmul.mubr.f32.gmra.mrb[0].mxu0 %v1574
        %v1645 = vpop.f32.mrb[0].mxu0
        %v1646 = vadd.f32 0.0, %v1645
        %v1647 = vpop.f32.mrb[0].mxu0
        %1648 = vmatprep.mubr.f32.mxu0 0.0
        %1649 = vmatmul.mubr.f32.gmra.mrb[0].mxu0 %v1577
        %v1650 = vpop.f32.mrb[0].mxu0
        %v1651 = vadd.f32 0.0, %v1650
        %v1652 = vpop.f32.mrb[0].mxu0
        %1653 = vdwg.mxu0
        %s1654 = scalar_lea.vmem [#allocation3], 128
        %v1655 = vld [vmem:[%s1654] sm:$0xff]
        %v1656 = vld [vmem:[%s1654 + $0x8] sm:$0xff]
        %v1657 = vld [vmem:[%s1654 + $0x10] sm:$0xff]
        %v1658 = vld [vmem:[%s1654 + $0x18] sm:$0xff]
        %1659 = vmatprep.subr.mxu0 0.0
        %1660 = vmatpush1.msra.mxu0 %v1655
        %1661 = vmatprep.subr.mxu0 0.0
        %1662 = vmatpush1.msra.mxu0 %v1656
        %1663 = vmatprep.subr.mxu0 0.0
        %1664 = vmatpush1.msra.mxu0 %v1657
        %1665 = vmatprep.subr.mxu0 0.0
        %1666 = vmatpush1.msra.mxu0 %v1658
        %1667 = vmatprep.subr.mxu0 0.0
        %1668 = vmatpush1.msra.mxu0 0.0
        %1669 = vmatprep.subr.mxu0 0.0
        %1670 = vmatpush1.msra.mxu0 0.0
        %1671 = vmatprep.subr.mxu0 0.0
        %1672 = vmatpush1.msra.mxu0 0.0
        %1673 = vmatprep.subr.mxu0 0.0
        %1674 = vmatpush1.msra.mxu0 0.0
        %1675 = vmatprep.subr.mxu0 0.0
        %1676 = vmatpush1.msra.mxu0 0.0
        %1677 = vmatprep.subr.mxu0 0.0
        %1678 = vmatpush1.msra.mxu0 0.0
        %1679 = vmatprep.subr.mxu0 0.0
        %1680 = vmatpush1.msra.mxu0 0.0
        %1681 = vmatprep.subr.mxu0 0.0
        %1682 = vmatpush1.msra.mxu0 0.0
        %1683 = vmatprep.subr.mxu0 0.0
        %1684 = vmatpush1.msra.mxu0 0.0
        %1685 = vmatprep.subr.mxu0 0.0
        %1686 = vmatpush1.msra.mxu0 0.0
        %1687 = vmatprep.subr.mxu0 0.0
        %1688 = vmatpush1.msra.mxu0 0.0
        %1689 = vmatprep.subr.mxu0 0.0
        %1690 = vmatpush1.msra.mxu0 0.0
        %1691 = vmatprep.subr.mxu0 0.0
        %1692 = vmatpush1.msra.mxu0 0.0
        %1693 = vmatprep.subr.mxu0 0.0
        %1694 = vmatpush1.msra.mxu0 0.0
        %1695 = vmatprep.subr.mxu0 0.0
        %1696 = vmatpush1.msra.mxu0 0.0
        %1697 = vmatprep.subr.mxu0 0.0
        %1698 = vmatpush1.msra.mxu0 0.0
        %1699 = vmatprep.subr.mxu0 0.0
        %1700 = vmatpush1.msra.mxu0 0.0
        %1701 = vmatprep.subr.mxu0 0.0
        %1702 = vmatpush1.msra.mxu0 0.0
        %1703 = vmatprep.subr.mxu0 0.0
        %1704 = vmatpush1.msra.mxu0 0.0
        %1705 = vmatprep.subr.mxu0 0.0
        %1706 = vmatpush1.msra.mxu0 0.0
        %1707 = vmatprep.subr.mxu0 0.0
        %1708 = vmatpush1.msra.mxu0 0.0
        %1709 = vmatprep.subr.mxu0 0.0
        %1710 = vmatpush1.msra.mxu0 0.0
        %1711 = vmatprep.subr.mxu0 0.0
        %1712 = vmatpush1.msra.mxu0 0.0
        %1713 = vmatprep.subr.mxu0 0.0
        %1714 = vmatpush1.msra.mxu0 0.0
        %1715 = vmatprep.subr.mxu0 0.0
        %1716 = vmatpush1.msra.mxu0 0.0
        %1717 = vmatprep.subr.mxu0 0.0
        %1718 = vmatpush1.msra.mxu0 0.0
        %1719 = vmatprep.subr.mxu0 0.0
        %1720 = vmatpush1.msra.mxu0 0.0
        %1721 = vmatprep.subr.mxu0 0.0
        %1722 = vmatpush1.msra.mxu0 0.0
        %1723 = vmatprep.mubr.f32.mxu0 0.0
        %1724 = vmatmul.mubr.f32.gmra.mrb[0].mxu0 %v1574
        %v1725 = vpop.f32.mrb[0].mxu0
        %v1726 = vadd.f32 0.0, %v1725
        %v1727 = vpop.f32.mrb[0].mxu0
        %1728 = vmatprep.mubr.f32.mxu0 0.0
        %1729 = vmatmul.mubr.f32.gmra.mrb[0].mxu0 %v1577
        %v1730 = vpop.f32.mrb[0].mxu0
        %v1731 = vadd.f32 0.0, %v1730
        %v1732 = vpop.f32.mrb[0].mxu0
        %1733 = vdwg.mxu0
        %1734 = vst.msk [vmem:[#allocation2] sm:$0xff] %vm364, %v1646
        %1735 = vst.msk [vmem:[#allocation2 + $0x8] sm:$0xff] %vm364, %v1651
        %1736 = vst.msk [vmem:[#allocation2 + $0x10] sm:$0xff] %vm364, %v1726
        %1737 = vst.msk [vmem:[#allocation2 + $0x18] sm:$0xff] %vm364, %v1731
        %v1738 = vld [vmem:[#allocation2] sm:$0xff]
        %v1739 = vld [vmem:[#allocation2 + $0x8] sm:$0xff]
        %v1740 = vld [vmem:[#allocation2 + $0x10] sm:$0xff]
        %v1741 = vld [vmem:[#allocation2 + $0x18] sm:$0xff]
        %1742 = vmatprep.subr.mxu0 0.0
        %1743 = vmatpush1.msra.mxu0 %v1738
        %1744 = vmatprep.subr.mxu0 0.0
        %1745 = vmatpush1.msra.mxu0 %v1739
        %1746 = vmatprep.subr.mxu0 0.0
        %1747 = vmatpush1.msra.mxu0 %v1740
        %1748 = vmatprep.subr.mxu0 0.0
        %1749 = vmatpush1.msra.mxu0 %v1741
        %1750 = vmatprep.subr.mxu0 0.0
        %1751 = vmatpush1.msra.mxu0 0.0
        %1752 = vmatprep.subr.mxu0 0.0
        %1753 = vmatpush1.msra.mxu0 0.0
        %1754 = vmatprep.subr.mxu0 0.0
        %1755 = vmatpush1.msra.mxu0 0.0
        %1756 = vmatprep.subr.mxu0 0.0
        %1757 = vmatpush1.msra.mxu0 0.0
        %1758 = vmatprep.subr.mxu0 0.0
        %1759 = vmatpush1.msra.mxu0 0.0
        %1760 = vmatprep.subr.mxu0 0.0
        %1761 = vmatpush1.msra.mxu0 0.0
        %1762 = vmatprep.subr.mxu0 0.0
        %1763 = vmatpush1.msra.mxu0 0.0
        %1764 = vmatprep.subr.mxu0 0.0
        %1765 = vmatpush1.msra.mxu0 0.0
        %1766 = vmatprep.subr.mxu0 0.0
        %1767 = vmatpush1.msra.mxu0 0.0
        %1768 = vmatprep.subr.mxu0 0.0
        %1769 = vmatpush1.msra.mxu0 0.0
        %1770 = vmatprep.subr.mxu0 0.0
        %1771 = vmatpush1.msra.mxu0 0.0
        %1772 = vmatprep.subr.mxu0 0.0
        %1773 = vmatpush1.msra.mxu0 0.0
        %1774 = vmatprep.subr.mxu0 0.0
        %1775 = vmatpush1.msra.mxu0 0.0
        %1776 = vmatprep.subr.mxu0 0.0
        %1777 = vmatpush1.msra.mxu0 0.0
        %1778 = vmatprep.subr.mxu0 0.0
        %1779 = vmatpush1.msra.mxu0 0.0
        %1780 = vmatprep.subr.mxu0 0.0
        %1781 = vmatpush1.msra.mxu0 0.0
        %1782 = vmatprep.subr.mxu0 0.0
        %1783 = vmatpush1.msra.mxu0 0.0
        %1784 = vmatprep.subr.mxu0 0.0
        %1785 = vmatpush1.msra.mxu0 0.0
        %1786 = vmatprep.subr.mxu0 0.0
        %1787 = vmatpush1.msra.mxu0 0.0
        %1788 = vmatprep.subr.mxu0 0.0
        %1789 = vmatpush1.msra.mxu0 0.0
        %1790 = vmatprep.subr.mxu0 0.0
        %1791 = vmatpush1.msra.mxu0 0.0
        %1792 = vmatprep.subr.mxu0 0.0
        %1793 = vmatpush1.msra.mxu0 0.0
        %1794 = vmatprep.subr.mxu0 0.0
        %1795 = vmatpush1.msra.mxu0 0.0
        %1796 = vmatprep.subr.mxu0 0.0
        %1797 = vmatpush1.msra.mxu0 0.0
        %1798 = vmatprep.subr.mxu0 0.0
        %1799 = vmatpush1.msra.mxu0 0.0
        %1800 = vmatprep.subr.mxu0 0.0
        %1801 = vmatpush1.msra.mxu0 0.0
        %1802 = vmatprep.subr.mxu0 0.0
        %1803 = vmatpush1.msra.mxu0 0.0
        %1804 = vmatprep.subr.mxu0 0.0
        %1805 = vmatpush1.msra.mxu0 0.0
        %1806 = vmatprep.mubr.f32.mxu0 0.0
        %1807 = vmatmul.mubr.f32.gmra.mrb[0].mxu0 %v534
        %v1808 = vpop.f32.mrb[0].mxu0
        %v1809 = vadd.f32 %v1264, %v1808
        %v1810 = vpop.f32.mrb[0].mxu0
        %1811 = vmatprep.mubr.f32.mxu0 0.0
        %1812 = vmatmul.mubr.f32.gmra.mrb[0].mxu0 %v537
        %v1813 = vpop.f32.mrb[0].mxu0
        %v1814 = vadd.f32 %v1265, %v1813
        %v1815 = vpop.f32.mrb[0].mxu0
        %1816 = vdwg.mxu0
        %v1817 = vsel %vm364, %v1809, 0.0
        %v1818 = vsel %vm364, %v1814, 0.0
        %v1819 = vadd.f32 %v1817, %v1818
        %v1820 = vrot.slane %v1819, 4
        %v1821 = vadd.f32 %v1819, %v1820
        %v1822 = vrot.slane %v1821, 2
        %v1823 = vadd.f32 %v1821, %v1822
        %v1824 = vrot.slane %v1823, 1
        %v1825 = vadd.f32 %v1823, %v1824
        %v1826 = vmul.f32 %v1825, %v623
        %v1827 = vsub.f32 %v1809, %v1826
        %v1828 = vsub.f32 %v1814, %v1826
        %v1829 = vmul.f32 %v1827, %v1827
        %v1830 = vmul.f32 %v1828, %v1828
        %v1831 = vsel %vm364, %v1829, 0.0
        %v1832 = vsel %vm364, %v1830, 0.0
        %v1833 = vadd.f32 %v1831, %v1832
        %v1834 = vrot.slane %v1833, 4
        %v1835 = vadd.f32 %v1833, %v1834
        %v1836 = vrot.slane %v1835, 2
        %v1837 = vadd.f32 %v1835, %v1836
        %v1838 = vrot.slane %v1837, 1
        %v1839 = vadd.f32 %v1837, %v1838
        %v1840 = vmul.f32 %v1839, %v623
        %s1841 = scalar_lea.vmem %s4, 4
        %v1842 = vld [vmem:[%s1841] sm:$0x1]
        %v1843 = vadd.f32 %v1840, 1e-05
        %v1844 = vrsqrt.pop %v1843
        %v1845 = vmul.f32 %v1842, %v1844
        %s1846 = scalar_lea.vmem %s5, 4
        %v1847 = vld [vmem:[%s1846] sm:$0x1]
        %v1848 = vmul.f32 %v1826, %v1845
        %v1849 = vsub.f32 %v1847, %v1848
        %v1851 = vlaneseq
        %v1852 = vshrl.u32 %v1851, 7
        %v1853 = vsub.s32 0, %v1852
        %v1854 = vrot.slane %v1845, %v1853
        %v1856 = vmul.f32 %v1809, %v1854
        %v1857 = vmul.f32 %v1814, %v1854
        %v1859 = vlaneseq
        %v1860 = vshrl.u32 %v1859, 7
        %v1861 = vsub.s32 0, %v1860
        %v1862 = vrot.slane %v1849, %v1861
        %v1864 = vadd.f32 %v1856, %v1862
        %v1865 = vadd.f32 %v1857, %v1862
        %v1866 = vld [vmem:[#allocation5] sm:$0xff]
        %v1867 = vld [vmem:[#allocation5 + $0x8] sm:$0xff]
        %v1868 = vld [vmem:[#allocation5 + $0x10] sm:$0xff]
        %v1869 = vld [vmem:[#allocation5 + $0x18] sm:$0xff]
        %v1870 = vld [vmem:[%s7] sm:$0x1]
        %v1872 = vlaneseq
        %v1873 = vshrl.u32 %v1872, 7
        %v1874 = vsub.s32 0, %v1873
        %v1875 = vrot.slane %v1870, %v1874
        %v1878 = vsel %vm364, %v1864, 0
        %v1881 = vsel %vm364, %v1865, 0
        %1883 = vmatprep.subr.mxu0 0.0
        %1884 = vmatpush1.msra.mxu0 %v1866
        %1885 = vmatprep.subr.mxu0 0.0
        %1886 = vmatpush1.msra.mxu0 %v1867
        %1887 = vmatprep.subr.mxu0 0.0
        %1888 = vmatpush1.msra.mxu0 %v1868
        %1889 = vmatprep.subr.mxu0 0.0
        %1890 = vmatpush1.msra.mxu0 %v1869
        %1891 = vmatprep.subr.mxu0 0.0
        %1892 = vmatpush1.msra.mxu0 0.0
        %1893 = vmatprep.subr.mxu0 0.0
        %1894 = vmatpush1.msra.mxu0 0.0
        %1895 = vmatprep.subr.mxu0 0.0
        %1896 = vmatpush1.msra.mxu0 0.0
        %1897 = vmatprep.subr.mxu0 0.0
        %1898 = vmatpush1.msra.mxu0 0.0
        %1899 = vmatprep.subr.mxu0 0.0
        %1900 = vmatpush1.msra.mxu0 0.0
        %1901 = vmatprep.subr.mxu0 0.0
        %1902 = vmatpush1.msra.mxu0 0.0
        %1903 = vmatprep.subr.mxu0 0.0
        %1904 = vmatpush1.msra.mxu0 0.0
        %1905 = vmatprep.subr.mxu0 0.0
        %1906 = vmatpush1.msra.mxu0 0.0
        %1907 = vmatprep.subr.mxu0 0.0
        %1908 = vmatpush1.msra.mxu0 0.0
        %1909 = vmatprep.subr.mxu0 0.0
        %1910 = vmatpush1.msra.mxu0 0.0
        %1911 = vmatprep.subr.mxu0 0.0
        %1912 = vmatpush1.msra.mxu0 0.0
        %1913 = vmatprep.subr.mxu0 0.0
        %1914 = vmatpush1.msra.mxu0 0.0
        %1915 = vmatprep.subr.mxu0 0.0
        %1916 = vmatpush1.msra.mxu0 0.0
        %1917 = vmatprep.subr.mxu0 0.0
        %1918 = vmatpush1.msra.mxu0 0.0
        %1919 = vmatprep.subr.mxu0 0.0
        %1920 = vmatpush1.msra.mxu0 0.0
        %1921 = vmatprep.subr.mxu0 0.0
        %1922 = vmatpush1.msra.mxu0 0.0
        %1923 = vmatprep.subr.mxu0 0.0
        %1924 = vmatpush1.msra.mxu0 0.0
        %1925 = vmatprep.subr.mxu0 0.0
        %1926 = vmatpush1.msra.mxu0 0.0
        %1927 = vmatprep.subr.mxu0 0.0
        %1928 = vmatpush1.msra.mxu0 0.0
        %1929 = vmatprep.subr.mxu0 0.0
        %1930 = vmatpush1.msra.mxu0 0.0
        %1931 = vmatprep.subr.mxu0 0.0
        %1932 = vmatpush1.msra.mxu0 0.0
        %1933 = vmatprep.subr.mxu0 0.0
        %1934 = vmatpush1.msra.mxu0 0.0
        %1935 = vmatprep.subr.mxu0 0.0
        %1936 = vmatpush1.msra.mxu0 0.0
        %1937 = vmatprep.subr.mxu0 0.0
        %1938 = vmatpush1.msra.mxu0 0.0
        %1939 = vmatprep.subr.mxu0 0.0
        %1940 = vmatpush1.msra.mxu0 0.0
        %1941 = vmatprep.subr.mxu0 0.0
        %1942 = vmatpush1.msra.mxu0 0.0
        %1943 = vmatprep.subr.mxu0 0.0
        %1944 = vmatpush1.msra.mxu0 0.0
        %1945 = vmatprep.subr.mxu0 0.0
        %1946 = vmatpush1.msra.mxu0 0.0
        %1947 = vmatprep.mubr.f32.mxu0 0.0
        %1948 = vmatmul.mubr.f32.gmra.mrb[0].mxu0 %v1878
        %v1949 = vpop.f32.mrb[0].mxu0
        %v1950 = vadd.f32 %v1875, %v1949
        %v1951 = vpop.f32.mrb[0].mxu0
        %1952 = vmatprep.mubr.f32.mxu0 0.0
        %1953 = vmatmul.mubr.f32.gmra.mrb[0].mxu0 %v1881
        %v1954 = vpop.f32.mrb[0].mxu0
        %v1955 = vadd.f32 %v1875, %v1954
        %v1956 = vpop.f32.mrb[0].mxu0
        %1957 = vdwg.mxu0
        %1958 = vst [vmem:[%s355] sm:$0xff] %v1950
        %1959 = vst [vmem:[%s355 + $0x8] sm:$0xff] %v1955
        %p1960 = scmp.lt.s32.totalorder %s21, 3
        %s1961 = scalar_select %p1960, %s21, 3
        %s1962 = smul.addr %s1961, 2
        %s1963 = smul.addr %s1962, 8
        %s1964 = scalar_lea.vmem %s8, %s1963
        // Predicated region
        $region61: #{forward.1} parent=51 // pred_check
          %p1965 = pneg %p217
        $region62: #{forward.1} parent=51 // pred_check_branch
          %1967 = sbr.rel (%p1965) target = $region64
        $region63: #{forward.1} parent=51 // pred_region
          _
        $region64: #{forward.1} parent=51 // pred_fallthru
          _
      $region52: #{forward.1} parent=5 // pred_fallthru
        _
      %p1968 = scmp.le.s32.totalorder 2, %s16
      // Predicated region
      $region65: #{forward.1} parent=5 // pred_check
        %p1969 = pneg %p1968
      $region66: #{forward.1} parent=5 // pred_check_branch
        %1971 = sbr.rel (%p1969) target = $region68
      $region67: #{forward.1} parent=5 // pred_region
        %s1972 = ssub.s32 %s16, 2
        // Predicated region
        $region69: #{forward.1} parent=67 // pred_check
          %p1973 = pneg %p223
        $region70: #{forward.1} parent=67 // pred_check_branch
          %1975 = sbr.rel (%p1973) target = $region72
        $region71: #{forward.1} parent=67 // pred_region
          %p1976 = scmp.lt.s32.totalorder %s22, 3
          %s1977 = scalar_select %p1976, %s22, 3
          %s1978 = smul.addr %s1977, 2
          %s1979 = smul.addr %s1978, 8
          %s1980 = scalar_lea.vmem %s8, %s1979
        $region72: #{forward.1} parent=67 // pred_fallthru
          _
      $region68: #{forward.1} parent=5 // pred_fallthru
        _
    $region6: #{forward.1} parent=1 // loop_footer
      %s20 = sadd.s32 1, %s16
    $region7: #{forward.1} parent=1 // loop_footer_branch
      %15 = sbr.rel target = $region3
    $region8: #{forward.1} parent=1 // loop_exit
      _
    %1981 = vsyncpa [#allocation4], 1
    %s1982 = scalar_lea.sflag [#allocation4], 1
    %1983 = vsyncpa %s1982, 1
    %1984 = vsyncpa [#allocation6], 1

</llo_original>
